<compile_context>
chip_gen: v7x
topology: tpu7x:2x2x1
jax: 0.10.0
libtpu: 0.0.40
codegen_flags: <defaults>
</compile_context>

<pallas_src>
import math

import jax
import jax.numpy as jnp
from jax.experimental import pallas as pl
from jax.experimental.pallas import tpu as pltpu


def _round_up(x, m):
    return ((x + m - 1) // m) * m


def _dgn_kernel(x_ref, mask_ref, enc_w_ref, enc_b_ref,
                qkv_w_ref, qkv_b_ref, out_w_ref, out_b_ref,
                qnet_w_ref, qnet_b_ref, o_ref):
    """One grid step: BB batch elements.
    x_ref [BB, N, DIN], mask_ref [BB, N, N], o_ref [BB, N, DP]."""
    f32 = jnp.float32
    cdt = enc_w_ref.dtype                  # MXU operand dtype (f32 or bf16)
    bb, n, din = x_ref.shape
    hp = enc_w_ref.shape[1]                # padded hidden (lane-dense, 128)
    dp = qnet_w_ref.shape[1]               # padded #actions (lane-dense, 128)
    rows = bb * n
    neg_big = f32(9.0e15)

    # Flatten BB elements into one row slab so every linear layer below is a
    # single large MXU matmul (amortizes per-step overhead, fills MXU rows).
    x = x_ref[...].reshape(rows, din).astype(cdt)
    mask3 = mask_ref[...].astype(f32)      # [BB, N, N]

    # --- Encoder: h = relu(x @ We + be) ------------------------------------
    h = jnp.dot(x, enc_w_ref[...], preferred_element_type=f32)
    h = jnp.maximum(h + enc_b_ref[...].astype(f32), 0.0)

    # --- Two attention layers (statically unrolled) -------------------------
    for layer in range(2):
        hc = h.astype(cdt)
        # Fused V|Q|K projection: one [rows, HP] @ [HP, 3HP] matmul.
        qkv = jnp.dot(hc, qkv_w_ref[layer], preferred_element_type=f32)
        qkv = jnp.maximum(qkv + qkv_b_ref[layer].astype(f32), 0.0)
        v = qkv[:, 0 * hp:1 * hp]
        q = qkv[:, 1 * hp:2 * hp]
        k = qkv[:, 2 * hp:3 * hp]

        # Attention stays batched per element (mask applied exactly as the
        # reference).  It is ~1% of total FLOPs, so the small per-block
        # matmuls are free while the big linear layers stay flattened.
        qb = q.reshape(bb, n, hp).astype(cdt)
        kb = k.reshape(bb, n, hp).astype(cdt)
        vb = v.reshape(bb, n, hp).astype(cdt)
        # NOTE(v6e): last-dim contraction may emit an XLU transpose; at
        # [N, HP] per block this is noise — verify in the bundle dump before
        # restructuring.
        logits = jnp.einsum("bnh,bmh->bnm", qb, kb,
                            preferred_element_type=f32)
        logits = logits * mask3 - neg_big * (1.0 - mask3)

        # numerically-stable softmax over the agent axis (f32 throughout)
        m = jnp.max(logits, axis=-1, keepdims=True)
        e = jnp.exp(logits - m)
        att = e / jnp.sum(e, axis=-1, keepdims=True)

        o3 = jnp.einsum("bnm,bmh->bnh", att.astype(cdt), vb,
                        preferred_element_type=f32)
        o = o3.reshape(rows, hp).astype(cdt)
        h = jnp.dot(o, out_w_ref[layer], preferred_element_type=f32)
        h = jnp.maximum(h + out_b_ref[layer].astype(f32), 0.0)

    # --- Q head (no relu); lane-dense padded output --------------------------
    qo = jnp.dot(h.astype(cdt), qnet_w_ref[...], preferred_element_type=f32)
    qo = qo + qnet_b_ref[...].astype(f32)
    o_ref[...] = qo.reshape(bb, n, dp).astype(o_ref.dtype)


def init_dgn_params(key, num_inputs, hidden_dim, num_actions,
                    dtype=jnp.float32, lane=128):
    """nn.Linear-style init (U(-1/sqrt(fan_in), 1/sqrt(fan_in))), stored
    pre-transposed as [in, out].  Hidden and Q-head output dims are
    zero-padded to a lane-dense multiple of `lane` (zero rows/cols/bias ->
    identical semantics).  V/Q/K weights+biases are packed per layer."""
    hp = _round_up(hidden_dim, lane)
    dp = _round_up(num_actions, lane)
    keys = iter(jax.random.split(key, 32))

    def linear(fan_in, fan_out, pad_in, pad_out):
        bound = 1.0 / math.sqrt(fan_in)
        w = jax.random.uniform(next(keys), (fan_in, fan_out), jnp.float32,
                               -bound, bound)
        b = jax.random.uniform(next(keys), (1, fan_out), jnp.float32,
                               -bound, bound)
        wp = jnp.zeros((pad_in, pad_out), dtype).at[:fan_in, :fan_out].set(
            w.astype(dtype))
        bp = jnp.zeros((1, pad_out), dtype).at[:, :fan_out].set(b.astype(dtype))
        return wp, bp

    enc_w, enc_b = linear(num_inputs, hidden_dim, num_inputs, hp)

    qkv_ws, qkv_bs, out_ws, out_bs = [], [], [], []
    for _ in range(2):
        wv, bv = linear(hidden_dim, hidden_dim, hp, hp)
        wq, bq = linear(hidden_dim, hidden_dim, hp, hp)
        wk, bk = linear(hidden_dim, hidden_dim, hp, hp)
        wo, bo = linear(hidden_dim, hidden_dim, hp, hp)
        qkv_ws.append(jnp.concatenate([wv, wq, wk], axis=1))   # [HP, 3HP]
        qkv_bs.append(jnp.concatenate([bv, bq, bk], axis=1))   # [1, 3HP]
        out_ws.append(wo)
        out_bs.append(bo)

    qnet_w, qnet_b = linear(hidden_dim, num_actions, hp, dp)

    return dict(enc_w=enc_w, enc_b=enc_b,
                qkv_w=jnp.stack(qkv_ws), qkv_b=jnp.stack(qkv_bs),
                out_w=jnp.stack(out_ws), out_b=jnp.stack(out_bs),
                qnet_w=qnet_w, qnet_b=qnet_b,
                num_actions=num_actions, hidden_dim=hidden_dim)


def dgn_forward(x, mask, params, block_batch=None):
    """x: [B, N, din]; mask: [B, N, N]; returns q-values [B, N, num_actions]."""
    b, n, din = x.shape
    enc_w, enc_b = params["enc_w"], params["enc_b"]
    qkv_w, qkv_b = params["qkv_w"], params["qkv_b"]
    out_w, out_b = params["out_w"], params["out_b"]
    qnet_w, qnet_b = params["qnet_w"], params["qnet_b"]
    num_actions = params["num_actions"]
    hp = enc_w.shape[1]
    dp = qnet_w.shape[1]

    # BB elements per grid step -> ~128 rows per matmul.  With >= 2 steps the
    # "parallel" grid axis shards across the two TensorCores on v7x.
    if block_batch is None:
        block_batch = max(1, 128 // n)
    bb = max(1, min(block_batch, b))
    steps = pl.cdiv(b, bb)
    b_pad = steps * bb
    if b_pad != b:                      # pad batch; padded rows are sliced off
        x = jnp.concatenate(
            [x, jnp.zeros((b_pad - b, n, din), x.dtype)], axis=0)
        mask = jnp.concatenate(
            [mask, jnp.zeros((b_pad - b, n, n), mask.dtype)], axis=0)

    flops = (2 * b_pad * n * (din * hp + 2 * (hp * 3 * hp + hp * hp) + hp * dp)
             + 8 * b_pad * n * n * hp)
    bytes_accessed = (x.size * x.dtype.itemsize
                      + mask.size * mask.dtype.itemsize
                      + b_pad * n * dp * x.dtype.itemsize
                      + sum(int(p.size) * p.dtype.itemsize
                            for p in (enc_w, enc_b, qkv_w, qkv_b,
                                      out_w, out_b, qnet_w, qnet_b)))
    cost = pl.CostEstimate(flops=int(flops),
                           transcendentals=int(2 * b_pad * n * n),
                           bytes_accessed=int(bytes_accessed))

    grid_spec = pl.GridSpec(
        grid=(steps,),
        in_specs=[
            pl.BlockSpec((bb, n, din), lambda i: (i, 0, 0)),    # x block
            pl.BlockSpec((bb, n, n), lambda i: (i, 0, 0)),      # mask block
            pl.BlockSpec(enc_w.shape, lambda i: (0, 0)),        # weights stay
            pl.BlockSpec(enc_b.shape, lambda i: (0, 0)),        # VMEM-resident
            pl.BlockSpec(qkv_w.shape, lambda i: (0, 0, 0)),
            pl.BlockSpec(qkv_b.shape, lambda i: (0, 0, 0)),
            pl.BlockSpec(out_w.shape, lambda i: (0, 0, 0)),
            pl.BlockSpec(out_b.shape, lambda i: (0, 0, 0)),
            pl.BlockSpec(qnet_w.shape, lambda i: (0, 0)),
            pl.BlockSpec(qnet_b.shape, lambda i: (0, 0)),
        ],
        out_specs=pl.BlockSpec((bb, n, dp), lambda i: (i, 0, 0)),
    )

    out = pl.pallas_call(
        _dgn_kernel,
        out_shape=jax.ShapeDtypeStruct((b_pad, n, dp), x.dtype),
        grid_spec=grid_spec,
        compiler_params=pltpu.CompilerParams(
            dimension_semantics=("parallel",)),
        cost_estimate=cost,
    )(x, mask, enc_w, enc_b, qkv_w, qkv_b, out_w, out_b, qnet_w, qnet_b)

    return out[:b, :, :num_actions]


def dgn_reference(x, mask, params):
    """Pure-JAX (f32) reference matching the PyTorch DGN forward."""
    f32 = jnp.float32
    x = x.astype(f32)
    mask = mask.astype(f32)
    hp = params["enc_w"].shape[1]
    na = params["num_actions"]

    h = jax.nn.relu(x @ params["enc_w"].astype(f32)
                    + params["enc_b"].astype(f32))
    for layer in range(2):
        qkv_w = params["qkv_w"][layer].astype(f32)
        qkv_b = params["qkv_b"][layer].astype(f32)
        wv, wq, wk = qkv_w[:, :hp], qkv_w[:, hp:2 * hp], qkv_w[:, 2 * hp:]
        bv, bq, bk = qkv_b[:, :hp], qkv_b[:, hp:2 * hp], qkv_b[:, 2 * hp:]
        v = jax.nn.relu(h @ wv + bv)
        q = jax.nn.relu(h @ wq + bq)
        k = jax.nn.relu(h @ wk + bk)
        logits = jnp.einsum("bnh,bmh->bnm", q, k) * mask - 9.0e15 * (1.0 - mask)
        att = jax.nn.softmax(logits, axis=-1)
        o = jnp.einsum("bnm,bmh->bnh", att, v)
        h = jax.nn.relu(o @ params["out_w"][layer].astype(f32)
                        + params["out_b"][layer].astype(f32))
    return (h @ params["qnet_w"].astype(f32)
            + params["qnet_b"].astype(f32))[..., :na]


if __name__ == "__main__":
    key = jax.random.PRNGKey(0)
    k_x, k_p = jax.random.split(key)

    batch, n_agent, num_inputs, hidden_dim, num_actions = 2, 8, 32, 32, 16

    x = jax.random.normal(k_x, (batch, n_agent, num_inputs), jnp.float32)
    # deterministic adjacency mask: each agent attends to itself + neighbours
    idx = jnp.arange(n_agent)
    mask2d = (jnp.abs(idx[:, None] - idx[None, :]) <= 1).astype(jnp.float32)
    mask = jnp.tile(mask2d[None], (batch, 1, 1))

    # ---- f32 params: tight correctness check -------------------------------
    params = init_dgn_params(k_p, num_inputs, hidden_dim, num_actions,
                             dtype=jnp.float32)
    q = jax.block_until_ready(dgn_forward(x, mask, params))
    q_ref = dgn_reference(x, mask, params)
    assert q.shape == (batch, n_agent, num_actions)
    assert jnp.allclose(q, q_ref, atol=2e-3, rtol=2e-3), \
        float(jnp.max(jnp.abs(q - q_ref)))

    # ---- bf16 params/activations: bf16 MXU path, f32 accumulation ----------
    params_bf16 = init_dgn_params(k_p, num_inputs, hidden_dim, num_actions,
                                  dtype=jnp.bfloat16)
    x_bf16 = x.astype(jnp.bfloat16)
    q_bf = jax.block_until_ready(dgn_forward(x_bf16, mask, params_bf16))
    q_bf_ref = dgn_reference(x_bf16, mask, params_bf16)
    q_bf32 = q_bf.astype(jnp.float32)
    assert jnp.allclose(q_bf32, q_bf_ref, atol=1e-1, rtol=1e-1), \
        float(jnp.max(jnp.abs(q_bf32 - q_bf_ref)))

    print("KERNEL_OK")
</pallas_src>

<mosaic_0001>
module attributes {stable_mosaic.version = 11 : i64} {
  func.func @_dgn_kernel(%arg0: i32, %arg1: memref<2x8x32xf32, #tpu.memory_space<vmem>>, %arg2: memref<2x8x8xf32, #tpu.memory_space<vmem>>, %arg3: memref<32x128xf32, #tpu.memory_space<vmem>>, %arg4: memref<1x128xf32, #tpu.memory_space<vmem>>, %arg5: memref<2x128x384xf32, #tpu.memory_space<vmem>>, %arg6: memref<2x1x384xf32, #tpu.memory_space<vmem>>, %arg7: memref<2x128x128xf32, #tpu.memory_space<vmem>>, %arg8: memref<2x1x128xf32, #tpu.memory_space<vmem>>, %arg9: memref<128x128xf32, #tpu.memory_space<vmem>>, %arg10: memref<1x128xf32, #tpu.memory_space<vmem>>, %arg11: memref<2x8x128xf32, #tpu.memory_space<vmem>>) attributes {dimension_semantics = [#tpu.dimension_semantics<parallel>], iteration_bounds = array<i64: 1>, scalar_prefetch = 0 : i64, scratch_operands = 0 : i64, tpu.core_type = #tpu.core_type<tc>, window_params = [{transform_indices = @transform_0, window_bounds = array<i64: 2, 8, 32>}, {transform_indices = @transform_1, window_bounds = array<i64: 2, 8, 8>}, {pipeline_mode = #tpu.pipeline_mode<synchronous>, transform_indices = @transform_2, window_bounds = array<i64: 32, 128>}, {pipeline_mode = #tpu.pipeline_mode<synchronous>, transform_indices = @transform_3, window_bounds = array<i64: 1, 128>}, {pipeline_mode = #tpu.pipeline_mode<synchronous>, transform_indices = @transform_4, window_bounds = array<i64: 2, 128, 384>}, {pipeline_mode = #tpu.pipeline_mode<synchronous>, transform_indices = @transform_5, window_bounds = array<i64: 2, 1, 384>}, {pipeline_mode = #tpu.pipeline_mode<synchronous>, transform_indices = @transform_6, window_bounds = array<i64: 2, 128, 128>}, {pipeline_mode = #tpu.pipeline_mode<synchronous>, transform_indices = @transform_7, window_bounds = array<i64: 2, 1, 128>}, {pipeline_mode = #tpu.pipeline_mode<synchronous>, transform_indices = @transform_8, window_bounds = array<i64: 128, 128>}, {pipeline_mode = #tpu.pipeline_mode<synchronous>, transform_indices = @transform_9, window_bounds = array<i64: 1, 128>}, {transform_indices = @transform_10, window_bounds = array<i64: 2, 8, 128>}]} {
    %c0 = arith.constant 0 : index
    %c0_0 = arith.constant 0 : index
    %c0_1 = arith.constant 0 : index
    %0 = vector.load %arg1[%c0, %c0_0, %c0_1] : memref<2x8x32xf32, #tpu.memory_space<vmem>>, vector<2x8x32xf32>
    %1 = vector.shape_cast %0 : vector<2x8x32xf32> to vector<16x32xf32>
    %c0_2 = arith.constant 0 : index
    %c0_3 = arith.constant 0 : index
    %c0_4 = arith.constant 0 : index
    %2 = vector.load %arg2[%c0_2, %c0_3, %c0_4] : memref<2x8x8xf32, #tpu.memory_space<vmem>>, vector<2x8x8xf32>
    %c0_5 = arith.constant 0 : index
    %c0_6 = arith.constant 0 : index
    %3 = vector.load %arg3[%c0_5, %c0_6] : memref<32x128xf32, #tpu.memory_space<vmem>>, vector<32x128xf32>
    %cst = arith.constant dense<0.000000e+00> : vector<16x128xf32>
    %4 = tpu.matmul %1, %3, %cst {dimension_numbers = #tpu.dot_dimension_numbers<[1], [0], [0], [1], [0, 0, 1, 1], [], []>} : vector<16x32xf32>, vector<32x128xf32>, vector<16x128xf32> -> vector<16x128xf32>
    %c0_7 = arith.constant 0 : index
    %c0_8 = arith.constant 0 : index
    %5 = vector.load %arg4[%c0_7, %c0_8] : memref<1x128xf32, #tpu.memory_space<vmem>>, vector<1x128xf32>
    %6 = vector.broadcast %5 : vector<1x128xf32> to vector<16x128xf32>
    %7 = arith.addf %4, %6 : vector<16x128xf32>
    %cst_9 = arith.constant 0.000000e+00 : f32
    %8 = vector.broadcast %cst_9 : f32 to vector<16x128xf32>
    %9 = arith.maximumf %7, %8 : vector<16x128xf32>
    %c0_10 = arith.constant 0 : index
    %c0_11 = arith.constant 0 : index
    %c0_12 = arith.constant 0 : index
    %10 = vector.load %arg5[%c0_10, %c0_11, %c0_12] : memref<2x128x384xf32, #tpu.memory_space<vmem>>, vector<1x128x384xf32>
    %11 = vector.shape_cast %10 : vector<1x128x384xf32> to vector<128x384xf32>
    %cst_13 = arith.constant dense<0.000000e+00> : vector<16x384xf32>
    %12 = tpu.matmul %9, %11, %cst_13 {dimension_numbers = #tpu.dot_dimension_numbers<[1], [0], [0], [1], [0, 0, 1, 1], [], []>} : vector<16x128xf32>, vector<128x384xf32>, vector<16x384xf32> -> vector<16x384xf32>
    %c0_14 = arith.constant 0 : index
    %c0_15 = arith.constant 0 : index
    %c0_16 = arith.constant 0 : index
    %13 = vector.load %arg6[%c0_14, %c0_15, %c0_16] : memref<2x1x384xf32, #tpu.memory_space<vmem>>, vector<1x1x384xf32>
    %14 = vector.shape_cast %13 : vector<1x1x384xf32> to vector<1x384xf32>
    %15 = vector.broadcast %14 : vector<1x384xf32> to vector<16x384xf32>
    %16 = arith.addf %12, %15 : vector<16x384xf32>
    %cst_17 = arith.constant 0.000000e+00 : f32
    %17 = vector.broadcast %cst_17 : f32 to vector<16x384xf32>
    %18 = arith.maximumf %16, %17 : vector<16x384xf32>
    %19 = vector.extract_strided_slice %18 {offsets = [0, 0], sizes = [16, 128], strides = [1, 1]} : vector<16x384xf32> to vector<16x128xf32>
    %20 = vector.extract_strided_slice %18 {offsets = [0, 128], sizes = [16, 128], strides = [1, 1]} : vector<16x384xf32> to vector<16x128xf32>
    %21 = vector.extract_strided_slice %18 {offsets = [0, 256], sizes = [16, 128], strides = [1, 1]} : vector<16x384xf32> to vector<16x128xf32>
    %22 = vector.shape_cast %20 : vector<16x128xf32> to vector<2x8x128xf32>
    %23 = vector.shape_cast %21 : vector<16x128xf32> to vector<2x8x128xf32>
    %24 = vector.shape_cast %19 : vector<16x128xf32> to vector<2x8x128xf32>
    "tpu.trace_start"() <{level = 10 : i32, message = "bnh,bmh->bnm"}> : () -> ()
    %cst_18 = arith.constant dense<0.000000e+00> : vector<2x8x8xf32>
    %25 = tpu.matmul %22, %23, %cst_18 {dimension_numbers = #tpu.dot_dimension_numbers<[2], [2], [1], [1], [0, 0, 0, 1, 1, 1], [0], [0]>} : vector<2x8x128xf32>, vector<2x8x128xf32>, vector<2x8x8xf32> -> vector<2x8x8xf32>
    "tpu.trace_stop"() : () -> ()
    %26 = arith.mulf %25, %2 : vector<2x8x8xf32>
    %cst_19 = arith.constant 1.000000e+00 : f32
    %27 = vector.broadcast %cst_19 : f32 to vector<2x8x8xf32>
    %28 = arith.subf %27, %2 : vector<2x8x8xf32>
    %cst_20 = arith.constant 9.000000e+15 : f32
    %29 = vector.broadcast %cst_20 : f32 to vector<2x8x8xf32>
    %30 = arith.mulf %29, %28 : vector<2x8x8xf32>
    %31 = arith.subf %26, %30 : vector<2x8x8xf32>
    %cst_21 = arith.constant dense<0xFF800000> : vector<2x8xf32>
    %32 = vector.multi_reduction <maximumf>, %31, %cst_21 [2] : vector<2x8x8xf32> to vector<2x8xf32>
    %33 = vector.shape_cast %32 : vector<2x8xf32> to vector<2x8x1xf32>
    %34 = vector.broadcast %33 : vector<2x8x1xf32> to vector<2x8x8xf32>
    %35 = arith.subf %31, %34 : vector<2x8x8xf32>
    %36 = math.exp %35 : vector<2x8x8xf32>
    %cst_22 = arith.constant dense<0.000000e+00> : vector<2x8xf32>
    %37 = vector.multi_reduction <add>, %36, %cst_22 [2] : vector<2x8x8xf32> to vector<2x8xf32>
    %38 = vector.shape_cast %37 : vector<2x8xf32> to vector<2x8x1xf32>
    %39 = vector.broadcast %38 : vector<2x8x1xf32> to vector<2x8x8xf32>
    %40 = arith.divf %36, %39 : vector<2x8x8xf32>
    "tpu.trace_start"() <{level = 10 : i32, message = "bnm,bmh->bnh"}> : () -> ()
    %cst_23 = arith.constant dense<0.000000e+00> : vector<2x8x128xf32>
    %41 = tpu.matmul %40, %24, %cst_23 {dimension_numbers = #tpu.dot_dimension_numbers<[2], [1], [1], [2], [0, 0, 0, 1, 1, 2], [0], [0]>} : vector<2x8x8xf32>, vector<2x8x128xf32>, vector<2x8x128xf32> -> vector<2x8x128xf32>
    "tpu.trace_stop"() : () -> ()
    %42 = vector.shape_cast %41 : vector<2x8x128xf32> to vector<16x128xf32>
    %c0_24 = arith.constant 0 : index
    %c0_25 = arith.constant 0 : index
    %c0_26 = arith.constant 0 : index
    %43 = vector.load %arg7[%c0_24, %c0_25, %c0_26] : memref<2x128x128xf32, #tpu.memory_space<vmem>>, vector<1x128x128xf32>
    %44 = vector.shape_cast %43 : vector<1x128x128xf32> to vector<128x128xf32>
    %cst_27 = arith.constant dense<0.000000e+00> : vector<16x128xf32>
    %45 = tpu.matmul %42, %44, %cst_27 {dimension_numbers = #tpu.dot_dimension_numbers<[1], [0], [0], [1], [0, 0, 1, 1], [], []>} : vector<16x128xf32>, vector<128x128xf32>, vector<16x128xf32> -> vector<16x128xf32>
    %c0_28 = arith.constant 0 : index
    %c0_29 = arith.constant 0 : index
    %c0_30 = arith.constant 0 : index
    %46 = vector.load %arg8[%c0_28, %c0_29, %c0_30] : memref<2x1x128xf32, #tpu.memory_space<vmem>>, vector<1x1x128xf32>
    %47 = vector.shape_cast %46 : vector<1x1x128xf32> to vector<1x128xf32>
    %48 = vector.broadcast %47 : vector<1x128xf32> to vector<16x128xf32>
    %49 = arith.addf %45, %48 : vector<16x128xf32>
    %cst_31 = arith.constant 0.000000e+00 : f32
    %50 = vector.broadcast %cst_31 : f32 to vector<16x128xf32>
    %51 = arith.maximumf %49, %50 : vector<16x128xf32>
    %c1 = arith.constant 1 : index
    %c0_32 = arith.constant 0 : index
    %c0_33 = arith.constant 0 : index
    %52 = vector.load %arg5[%c1, %c0_32, %c0_33] : memref<2x128x384xf32, #tpu.memory_space<vmem>>, vector<1x128x384xf32>
    %53 = vector.shape_cast %52 : vector<1x128x384xf32> to vector<128x384xf32>
    %cst_34 = arith.constant dense<0.000000e+00> : vector<16x384xf32>
    %54 = tpu.matmul %51, %53, %cst_34 {dimension_numbers = #tpu.dot_dimension_numbers<[1], [0], [0], [1], [0, 0, 1, 1], [], []>} : vector<16x128xf32>, vector<128x384xf32>, vector<16x384xf32> -> vector<16x384xf32>
    %c1_35 = arith.constant 1 : index
    %c0_36 = arith.constant 0 : index
    %c0_37 = arith.constant 0 : index
    %55 = vector.load %arg6[%c1_35, %c0_36, %c0_37] : memref<2x1x384xf32, #tpu.memory_space<vmem>>, vector<1x1x384xf32>
    %56 = vector.shape_cast %55 : vector<1x1x384xf32> to vector<1x384xf32>
    %57 = vector.broadcast %56 : vector<1x384xf32> to vector<16x384xf32>
    %58 = arith.addf %54, %57 : vector<16x384xf32>
    %cst_38 = arith.constant 0.000000e+00 : f32
    %59 = vector.broadcast %cst_38 : f32 to vector<16x384xf32>
    %60 = arith.maximumf %58, %59 : vector<16x384xf32>
    %61 = vector.extract_strided_slice %60 {offsets = [0, 0], sizes = [16, 128], strides = [1, 1]} : vector<16x384xf32> to vector<16x128xf32>
    %62 = vector.extract_strided_slice %60 {offsets = [0, 128], sizes = [16, 128], strides = [1, 1]} : vector<16x384xf32> to vector<16x128xf32>
    %63 = vector.extract_strided_slice %60 {offsets = [0, 256], sizes = [16, 128], strides = [1, 1]} : vector<16x384xf32> to vector<16x128xf32>
    %64 = vector.shape_cast %62 : vector<16x128xf32> to vector<2x8x128xf32>
    %65 = vector.shape_cast %63 : vector<16x128xf32> to vector<2x8x128xf32>
    %66 = vector.shape_cast %61 : vector<16x128xf32> to vector<2x8x128xf32>
    "tpu.trace_start"() <{level = 10 : i32, message = "bnh,bmh->bnm"}> : () -> ()
    %cst_39 = arith.constant dense<0.000000e+00> : vector<2x8x8xf32>
    %67 = tpu.matmul %64, %65, %cst_39 {dimension_numbers = #tpu.dot_dimension_numbers<[2], [2], [1], [1], [0, 0, 0, 1, 1, 1], [0], [0]>} : vector<2x8x128xf32>, vector<2x8x128xf32>, vector<2x8x8xf32> -> vector<2x8x8xf32>
    "tpu.trace_stop"() : () -> ()
    %68 = arith.mulf %67, %2 : vector<2x8x8xf32>
    %cst_40 = arith.constant 1.000000e+00 : f32
    %69 = vector.broadcast %cst_40 : f32 to vector<2x8x8xf32>
    %70 = arith.subf %69, %2 : vector<2x8x8xf32>
    %cst_41 = arith.constant 9.000000e+15 : f32
    %71 = vector.broadcast %cst_41 : f32 to vector<2x8x8xf32>
    %72 = arith.mulf %71, %70 : vector<2x8x8xf32>
    %73 = arith.subf %68, %72 : vector<2x8x8xf32>
    %cst_42 = arith.constant dense<0xFF800000> : vector<2x8xf32>
    %74 = vector.multi_reduction <maximumf>, %73, %cst_42 [2] : vector<2x8x8xf32> to vector<2x8xf32>
    %75 = vector.shape_cast %74 : vector<2x8xf32> to vector<2x8x1xf32>
    %76 = vector.broadcast %75 : vector<2x8x1xf32> to vector<2x8x8xf32>
    %77 = arith.subf %73, %76 : vector<2x8x8xf32>
    %78 = math.exp %77 : vector<2x8x8xf32>
    %cst_43 = arith.constant dense<0.000000e+00> : vector<2x8xf32>
    %79 = vector.multi_reduction <add>, %78, %cst_43 [2] : vector<2x8x8xf32> to vector<2x8xf32>
    %80 = vector.shape_cast %79 : vector<2x8xf32> to vector<2x8x1xf32>
    %81 = vector.broadcast %80 : vector<2x8x1xf32> to vector<2x8x8xf32>
    %82 = arith.divf %78, %81 : vector<2x8x8xf32>
    "tpu.trace_start"() <{level = 10 : i32, message = "bnm,bmh->bnh"}> : () -> ()
    %cst_44 = arith.constant dense<0.000000e+00> : vector<2x8x128xf32>
    %83 = tpu.matmul %82, %66, %cst_44 {dimension_numbers = #tpu.dot_dimension_numbers<[2], [1], [1], [2], [0, 0, 0, 1, 1, 2], [0], [0]>} : vector<2x8x8xf32>, vector<2x8x128xf32>, vector<2x8x128xf32> -> vector<2x8x128xf32>
    "tpu.trace_stop"() : () -> ()
    %84 = vector.shape_cast %83 : vector<2x8x128xf32> to vector<16x128xf32>
    %c1_45 = arith.constant 1 : index
    %c0_46 = arith.constant 0 : index
    %c0_47 = arith.constant 0 : index
    %85 = vector.load %arg7[%c1_45, %c0_46, %c0_47] : memref<2x128x128xf32, #tpu.memory_space<vmem>>, vector<1x128x128xf32>
    %86 = vector.shape_cast %85 : vector<1x128x128xf32> to vector<128x128xf32>
    %cst_48 = arith.constant dense<0.000000e+00> : vector<16x128xf32>
    %87 = tpu.matmul %84, %86, %cst_48 {dimension_numbers = #tpu.dot_dimension_numbers<[1], [0], [0], [1], [0, 0, 1, 1], [], []>} : vector<16x128xf32>, vector<128x128xf32>, vector<16x128xf32> -> vector<16x128xf32>
    %c1_49 = arith.constant 1 : index
    %c0_50 = arith.constant 0 : index
    %c0_51 = arith.constant 0 : index
    %88 = vector.load %arg8[%c1_49, %c0_50, %c0_51] : memref<2x1x128xf32, #tpu.memory_space<vmem>>, vector<1x1x128xf32>
    %89 = vector.shape_cast %88 : vector<1x1x128xf32> to vector<1x128xf32>
    %90 = vector.broadcast %89 : vector<1x128xf32> to vector<16x128xf32>
    %91 = arith.addf %87, %90 : vector<16x128xf32>
    %cst_52 = arith.constant 0.000000e+00 : f32
    %92 = vector.broadcast %cst_52 : f32 to vector<16x128xf32>
    %93 = arith.maximumf %91, %92 : vector<16x128xf32>
    %c0_53 = arith.constant 0 : index
    %c0_54 = arith.constant 0 : index
    %94 = vector.load %arg9[%c0_53, %c0_54] : memref<128x128xf32, #tpu.memory_space<vmem>>, vector<128x128xf32>
    %cst_55 = arith.constant dense<0.000000e+00> : vector<16x128xf32>
    %95 = tpu.matmul %93, %94, %cst_55 {dimension_numbers = #tpu.dot_dimension_numbers<[1], [0], [0], [1], [0, 0, 1, 1], [], []>} : vector<16x128xf32>, vector<128x128xf32>, vector<16x128xf32> -> vector<16x128xf32>
    %c0_56 = arith.constant 0 : index
    %c0_57 = arith.constant 0 : index
    %96 = vector.load %arg10[%c0_56, %c0_57] : memref<1x128xf32, #tpu.memory_space<vmem>>, vector<1x128xf32>
    %97 = vector.broadcast %96 : vector<1x128xf32> to vector<16x128xf32>
    %98 = arith.addf %95, %97 : vector<16x128xf32>
    %99 = vector.shape_cast %98 : vector<16x128xf32> to vector<2x8x128xf32>
    %c0_58 = arith.constant 0 : index
    %c0_59 = arith.constant 0 : index
    %c0_60 = arith.constant 0 : index
    %100 = vector.load %arg11[%c0_58, %c0_59, %c0_60] : memref<2x8x128xf32, #tpu.memory_space<vmem>>, vector<2x8x128xf32>
    tpu.vector_store %arg11[%c0_58, %c0_59, %c0_60], %99 {strides = array<i32>} : memref<2x8x128xf32, #tpu.memory_space<vmem>>, vector<2x8x128xf32>,
    return
  }
  func.func @transform_0(%arg0: i32) -> (i32, i32, i32) {
    %c0_i32 = arith.constant 0 : i32
    %c0_i32_0 = arith.constant 0 : i32
    %c0_i32_1 = arith.constant 0 : i32
    return %arg0, %c0_i32, %c0_i32_0 : i32, i32, i32
  }
  func.func @transform_1(%arg0: i32) -> (i32, i32, i32) {
    %c0_i32 = arith.constant 0 : i32
    %c0_i32_0 = arith.constant 0 : i32
    %c0_i32_1 = arith.constant 0 : i32
    return %arg0, %c0_i32, %c0_i32_0 : i32, i32, i32
  }
  func.func @transform_2(%arg0: i32) -> (i32, i32) {
    %c0_i32 = arith.constant 0 : i32
    %c0_i32_0 = arith.constant 0 : i32
    %c0_i32_1 = arith.constant 0 : i32
    return %c0_i32, %c0_i32_0 : i32, i32
  }
  func.func @transform_3(%arg0: i32) -> (i32, i32) {
    %c0_i32 = arith.constant 0 : i32
    %c0_i32_0 = arith.constant 0 : i32
    %c0_i32_1 = arith.constant 0 : i32
    return %c0_i32, %c0_i32_0 : i32, i32
  }
  func.func @transform_4(%arg0: i32) -> (i32, i32, i32) {
    %c0_i32 = arith.constant 0 : i32
    %c0_i32_0 = arith.constant 0 : i32
    %c0_i32_1 = arith.constant 0 : i32
    %c0_i32_2 = arith.constant 0 : i32
    return %c0_i32, %c0_i32_0, %c0_i32_1 : i32, i32, i32
  }
  func.func @transform_5(%arg0: i32) -> (i32, i32, i32) {
    %c0_i32 = arith.constant 0 : i32
    %c0_i32_0 = arith.constant 0 : i32
    %c0_i32_1 = arith.constant 0 : i32
    %c0_i32_2 = arith.constant 0 : i32
    return %c0_i32, %c0_i32_0, %c0_i32_1 : i32, i32, i32
  }
  func.func @transform_6(%arg0: i32) -> (i32, i32, i32) {
    %c0_i32 = arith.constant 0 : i32
    %c0_i32_0 = arith.constant 0 : i32
    %c0_i32_1 = arith.constant 0 : i32
    %c0_i32_2 = arith.constant 0 : i32
    return %c0_i32, %c0_i32_0, %c0_i32_1 : i32, i32, i32
  }
  func.func @transform_7(%arg0: i32) -> (i32, i32, i32) {
    %c0_i32 = arith.constant 0 : i32
    %c0_i32_0 = arith.constant 0 : i32
    %c0_i32_1 = arith.constant 0 : i32
    %c0_i32_2 = arith.constant 0 : i32
    return %c0_i32, %c0_i32_0, %c0_i32_1 : i32, i32, i32
  }
  func.func @transform_8(%arg0: i32) -> (i32, i32) {
    %c0_i32 = arith.constant 0 : i32
    %c0_i32_0 = arith.constant 0 : i32
    %c0_i32_1 = arith.constant 0 : i32
    return %c0_i32, %c0_i32_0 : i32, i32
  }
  func.func @transform_9(%arg0: i32) -> (i32, i32) {
    %c0_i32 = arith.constant 0 : i32
    %c0_i32_0 = arith.constant 0 : i32
    %c0_i32_1 = arith.constant 0 : i32
    return %c0_i32, %c0_i32_0 : i32, i32
  }
  func.func @transform_10(%arg0: i32) -> (i32, i32, i32) {
    %c0_i32 = arith.constant 0 : i32
    %c0_i32_0 = arith.constant 0 : i32
    %c0_i32_1 = arith.constant 0 : i32
    return %arg0, %c0_i32, %c0_i32_0 : i32, i32, i32
  }
}

</mosaic_0001>

<llo_original>
// kernel: tpu_custom_call.1
$region0: #{tpu_custom_call.1}
  #allocation0 [shape = 'u32[]', space=smem, size = 0x4, offset = 0x4, fixed_abs, tag = 'smem constant byte address 0x4 - core index']
  #allocation1 [shape = 'u32[144,128]{1,0:T(1,128)}', space=vmem, size = 0x12000, scoped, tag = 'internal scratch']
  %s0 = inlined_call_operand.hbm [shape: f32[2,8,32], index: 0, kind: input, shape index: {}]
  %s1 = inlined_call_operand.hbm [shape: f32[2,8,8], index: 1, kind: input, shape index: {}]
  %s2 = inlined_call_operand.hbm [shape: f32[32,128], index: 2, kind: input, shape index: {}]
  %s3 = inlined_call_operand.vmem [shape: f32[1,128], index: 3, kind: input, shape index: {}]
  %s4 = inlined_call_operand.hbm [shape: f32[2,128,384], index: 4, kind: input, shape index: {}]
  %s5 = inlined_call_operand.vmem [shape: f32[2,1,384], index: 5, kind: input, shape index: {}]
  %s6 = inlined_call_operand.hbm [shape: f32[2,128,128], index: 6, kind: input, shape index: {}]
  %s7 = inlined_call_operand.vmem [shape: f32[2,1,128], index: 7, kind: input, shape index: {}]
  %s8 = inlined_call_operand.hbm [shape: f32[128,128], index: 8, kind: input, shape index: {}]
  %s9 = inlined_call_operand.vmem [shape: f32[1,128], index: 9, kind: input, shape index: {}]
  %s10 = inlined_call_operand.hbm [shape: f32[2,8,128], index: 10, kind: output, shape index: {}]
  %s11 = sld [smem:[#allocation0]]
  $region74: #{tpu_custom_call.1} parent=0
    _
  %s13 = ssub.s32 1, %s11
  %s14 = scalar_select 0, %s13, %s11
  $region1: #{tpu_custom_call.1} parent=0
    #allocation2 [shape = 'u8[8192]{0}', space=vmem, size = 0x2000, scoped, tag = 'input window, operand 0, single buffered']
    #allocation3 [shape = 's32[1]{0}', space=sflag, size = 0x4, scoped, tag = 'scoped memory for tpu_custom_call.1']
    #allocation4 [shape = 's32[1]{0}', space=sflag, size = 0x4, scoped, tag = 'scoped memory for tpu_custom_call.1']
    #allocation5 [shape = 'u8[8192]{0}', space=vmem, size = 0x2000, scoped, tag = 'input window, operand 1, single buffered']
    #allocation6 [shape = 's32[1]{0}', space=sflag, size = 0x4, scoped, tag = 'scoped memory for tpu_custom_call.1']
    #allocation7 [shape = 'u8[16384]{0}', space=vmem, size = 0x4000, scoped, tag = 'input window, operand 2, single buffered']
    #allocation8 [shape = 'u8[393216]{0}', space=vmem, size = 0x60000, scoped, tag = 'input window, operand 4, single buffered']
    #allocation9 [shape = 's32[1]{0}', space=sflag, size = 0x4, scoped, tag = 'scoped memory for tpu_custom_call.1']
    #allocation10 [shape = 'u8[131072]{0}', space=vmem, size = 0x20000, scoped, tag = 'input window, operand 6, single buffered']
    #allocation11 [shape = 'u8[65536]{0}', space=vmem, size = 0x10000, scoped, tag = 'input window, operand 8, single buffered']
    #allocation12 [shape = 's32[1]{0}', space=sflag, size = 0x4, scoped, tag = 'scoped memory for tpu_custom_call.1']
    #allocation13 [shape = 'u8[8192]{0}', space=vmem, size = 0x2000, scoped, tag = 'output window, operand 0, single buffered']
    %15 = vsyncpa [#allocation3], 0
    %16 = vsyncpa [#allocation6], 0
    %17 = vsyncpa [#allocation9], 0
    %18 = vsyncpa [#allocation12], 0
    %19 = vsyncpa [#allocation4], 0
    // Predicated region
    $region2: #{tpu_custom_call.1} parent=1 // pred_check
      _
    $region3: #{tpu_custom_call.1} parent=1 // pred_check_branch
      %21 = sbr.rel (0) target = $region5
    $region4: #{tpu_custom_call.1} parent=1 // pred_region
      %s23 = ssub.s32 256, 256
      %24 = vsyncadd [#allocation3], %s23
      %s25 = sshll.u32 [#allocation2], 4
      %s26 = int_to_ptr.vmem [resolvable:$true] %s25
      %31 = dma.hbm_to_vmem [thread:$0]  %s0, 256, %s26, [#allocation3], 128, 128, 8
    $region5: #{tpu_custom_call.1} parent=1 // pred_fallthru
      _
    // Predicated region
    $region6: #{tpu_custom_call.1} parent=1 // pred_check
      _
    $region7: #{tpu_custom_call.1} parent=1 // pred_check_branch
      %33 = sbr.rel (0) target = $region9
    $region8: #{tpu_custom_call.1} parent=1 // pred_region
      %s35 = ssub.s32 256, 256
      %36 = vsyncadd [#allocation6], %s35
      %s37 = sshll.u32 [#allocation5], 4
      %s38 = int_to_ptr.vmem [resolvable:$true] %s37
      %43 = dma.hbm_to_vmem [thread:$0]  %s1, 256, %s38, [#allocation6], 128, 128, 8
    $region9: #{tpu_custom_call.1} parent=1 // pred_fallthru
      _
    // Predicated region
    $region10: #{tpu_custom_call.1} parent=1 // pred_check
      _
    $region11: #{tpu_custom_call.1} parent=1 // pred_check_branch
      %45 = sbr.rel (0) target = $region13
    $region12: #{tpu_custom_call.1} parent=1 // pred_region
      %s47 = ssub.s32 512, 512
      %48 = vsyncadd [#allocation6], %s47
      %s49 = sshll.u32 [#allocation7], 4
      %s50 = int_to_ptr.vmem [resolvable:$true] %s49
      %55 = dma.hbm_to_vmem [thread:$0]  %s2, 512, %s50, [#allocation6], 128, 128, 8
    $region13: #{tpu_custom_call.1} parent=1 // pred_fallthru
      _
    // Predicated region
    $region14: #{tpu_custom_call.1} parent=1 // pred_check
      _
    $region15: #{tpu_custom_call.1} parent=1 // pred_check_branch
      %57 = sbr.rel (0) target = $region17
    $region16: #{tpu_custom_call.1} parent=1 // pred_region
      _
    $region17: #{tpu_custom_call.1} parent=1 // pred_fallthru
      _
    // Predicated region
    $region18: #{tpu_custom_call.1} parent=1 // pred_check
      _
    $region19: #{tpu_custom_call.1} parent=1 // pred_check_branch
      %59 = sbr.rel (0) target = $region21
    $region20: #{tpu_custom_call.1} parent=1 // pred_region
      %s61 = ssub.s32 12288, 12288
      %62 = vsyncadd [#allocation9], %s61
      %s63 = sshll.u32 [#allocation8], 4
      %s64 = int_to_ptr.vmem [resolvable:$true] %s63
      %69 = dma.hbm_to_vmem [thread:$0]  %s4, 12288, %s64, [#allocation9], 384, 384, 24
    $region21: #{tpu_custom_call.1} parent=1 // pred_fallthru
      _
    // Predicated region
    $region22: #{tpu_custom_call.1} parent=1 // pred_check
      _
    $region23: #{tpu_custom_call.1} parent=1 // pred_check_branch
      %71 = sbr.rel (0) target = $region25
    $region24: #{tpu_custom_call.1} parent=1 // pred_region
      _
    $region25: #{tpu_custom_call.1} parent=1 // pred_fallthru
      _
    // Predicated region
    $region26: #{tpu_custom_call.1} parent=1 // pred_check
      _
    $region27: #{tpu_custom_call.1} parent=1 // pred_check_branch
      %73 = sbr.rel (0) target = $region29
    $region28: #{tpu_custom_call.1} parent=1 // pred_region
      %s75 = ssub.s32 4096, 4096
      %76 = vsyncadd [#allocation9], %s75
      %s77 = sshll.u32 [#allocation10], 4
      %s78 = int_to_ptr.vmem [resolvable:$true] %s77
      %83 = dma.hbm_to_vmem [thread:$0]  %s6, 4096, %s78, [#allocation9], 128, 128, 8
    $region29: #{tpu_custom_call.1} parent=1 // pred_fallthru
      _
    // Predicated region
    $region30: #{tpu_custom_call.1} parent=1 // pred_check
      _
    $region31: #{tpu_custom_call.1} parent=1 // pred_check_branch
      %85 = sbr.rel (0) target = $region33
    $region32: #{tpu_custom_call.1} parent=1 // pred_region
      _
    $region33: #{tpu_custom_call.1} parent=1 // pred_fallthru
      _
    // Predicated region
    $region34: #{tpu_custom_call.1} parent=1 // pred_check
      _
    $region35: #{tpu_custom_call.1} parent=1 // pred_check_branch
      %87 = sbr.rel (0) target = $region37
    $region36: #{tpu_custom_call.1} parent=1 // pred_region
      %s89 = ssub.s32 2048, 2048
      %90 = vsyncadd [#allocation12], %s89
      %s91 = sshll.u32 [#allocation11], 4
      %s92 = int_to_ptr.vmem [resolvable:$true] %s91
      %97 = dma.hbm_to_vmem [thread:$0]  %s8, 2048, %s92, [#allocation12], 128, 128, 8
    $region37: #{tpu_custom_call.1} parent=1 // pred_fallthru
      _
    // Predicated region
    $region38: #{tpu_custom_call.1} parent=1 // pred_check
      _
    $region39: #{tpu_custom_call.1} parent=1 // pred_check_branch
      %99 = sbr.rel (0) target = $region41
    $region40: #{tpu_custom_call.1} parent=1 // pred_region
      _
    $region41: #{tpu_custom_call.1} parent=1 // pred_fallthru
      _
    // Predicated region
    $region42: #{tpu_custom_call.1} parent=1 // pred_check
      _
    $region43: #{tpu_custom_call.1} parent=1 // pred_check_branch
      %101 = sbr.rel (0) target = $region45
    $region44: #{tpu_custom_call.1} parent=1 // pred_region
      %102 = dma.done [#allocation3], 256
    $region45: #{tpu_custom_call.1} parent=1 // pred_fallthru
      _
    // Predicated region
    $region46: #{tpu_custom_call.1} parent=1 // pred_check
      _
    $region47: #{tpu_custom_call.1} parent=1 // pred_check_branch
      %104 = sbr.rel (0) target = $region49
    $region48: #{tpu_custom_call.1} parent=1 // pred_region
      %105 = dma.done [#allocation6], 256
    $region49: #{tpu_custom_call.1} parent=1 // pred_fallthru
      _
    // Predicated region
    $region50: #{tpu_custom_call.1} parent=1 // pred_check
      _
    $region51: #{tpu_custom_call.1} parent=1 // pred_check_branch
      %107 = sbr.rel (0) target = $region53
    $region52: #{tpu_custom_call.1} parent=1 // pred_region
      %108 = dma.done [#allocation6], 512
    $region53: #{tpu_custom_call.1} parent=1 // pred_fallthru
      _
    // Predicated region
    $region54: #{tpu_custom_call.1} parent=1 // pred_check
      _
    $region55: #{tpu_custom_call.1} parent=1 // pred_check_branch
      %110 = sbr.rel (0) target = $region57
    $region56: #{tpu_custom_call.1} parent=1 // pred_region
      %111 = dma.done [#allocation9], 12288
    $region57: #{tpu_custom_call.1} parent=1 // pred_fallthru
      _
    // Predicated region
    $region58: #{tpu_custom_call.1} parent=1 // pred_check
      _
    $region59: #{tpu_custom_call.1} parent=1 // pred_check_branch
      %113 = sbr.rel (0) target = $region61
    $region60: #{tpu_custom_call.1} parent=1 // pred_region
      %114 = dma.done [#allocation9], 4096
    $region61: #{tpu_custom_call.1} parent=1 // pred_fallthru
      _
    // Predicated region
    $region62: #{tpu_custom_call.1} parent=1 // pred_check
      _
    $region63: #{tpu_custom_call.1} parent=1 // pred_check_branch
      %116 = sbr.rel (0) target = $region65
    $region64: #{tpu_custom_call.1} parent=1 // pred_region
      %117 = dma.done [#allocation12], 2048
    $region65: #{tpu_custom_call.1} parent=1 // pred_fallthru
      _
    %v118 = vld [vmem:[#allocation2] sm:$0xff]
    %v119 = vld [vmem:[#allocation2 + $0x8] sm:$0xff]
    %v120 = vld [vmem:[#allocation5] sm:$0xff]
    %v121 = vld [vmem:[#allocation5 + $0x8] sm:$0xff]
    %v122 = vld [vmem:[#allocation7] sm:$0xff]
    %v123 = vld [vmem:[#allocation7 + $0x8] sm:$0xff]
    %v124 = vld [vmem:[#allocation7 + $0x10] sm:$0xff]
    %v125 = vld [vmem:[#allocation7 + $0x18] sm:$0xff]
    %v126 = vld [vmem:[%s3] sm:$0x1]
    %v128 = vlaneseq
    %v129 = vshrl.u32 %v128, 7
    %v130 = vsub.s32 0, %v129
    %v131 = vrot.slane %v126, %v130
    %vm133 = vcmask 261120
    %v135 = vsel %vm133, %v118, 0
    %v138 = vsel %vm133, %v119, 0
    %140 = vmatprep.subr.mxu0 0.0
    %141 = vmatpush1.msra.mxu0 %v122
    %142 = vmatprep.subr.mxu0 0.0
    %143 = vmatpush1.msra.mxu0 %v123
    %144 = vmatprep.subr.mxu0 0.0
    %145 = vmatpush1.msra.mxu0 %v124
    %146 = vmatprep.subr.mxu0 0.0
    %147 = vmatpush1.msra.mxu0 %v125
    %148 = vmatprep.subr.mxu0 0.0
    %149 = vmatpush1.msra.mxu0 0.0
    %150 = vmatprep.subr.mxu0 0.0
    %151 = vmatpush1.msra.mxu0 0.0
    %152 = vmatprep.subr.mxu0 0.0
    %153 = vmatpush1.msra.mxu0 0.0
    %154 = vmatprep.subr.mxu0 0.0
    %155 = vmatpush1.msra.mxu0 0.0
    %156 = vmatprep.subr.mxu0 0.0
    %157 = vmatpush1.msra.mxu0 0.0
    %158 = vmatprep.subr.mxu0 0.0
    %159 = vmatpush1.msra.mxu0 0.0
    %160 = vmatprep.subr.mxu0 0.0
    %161 = vmatpush1.msra.mxu0 0.0
    %162 = vmatprep.subr.mxu0 0.0
    %163 = vmatpush1.msra.mxu0 0.0
    %164 = vmatprep.subr.mxu0 0.0
    %165 = vmatpush1.msra.mxu0 0.0
    %166 = vmatprep.subr.mxu0 0.0
    %167 = vmatpush1.msra.mxu0 0.0
    %168 = vmatprep.subr.mxu0 0.0
    %169 = vmatpush1.msra.mxu0 0.0
    %170 = vmatprep.subr.mxu0 0.0
    %171 = vmatpush1.msra.mxu0 0.0
    %172 = vmatprep.subr.mxu0 0.0
    %173 = vmatpush1.msra.mxu0 0.0
    %174 = vmatprep.subr.mxu0 0.0
    %175 = vmatpush1.msra.mxu0 0.0
    %176 = vmatprep.subr.mxu0 0.0
    %177 = vmatpush1.msra.mxu0 0.0
    %178 = vmatprep.subr.mxu0 0.0
    %179 = vmatpush1.msra.mxu0 0.0
    %180 = vmatprep.subr.mxu0 0.0
    %181 = vmatpush1.msra.mxu0 0.0
    %182 = vmatprep.subr.mxu0 0.0
    %183 = vmatpush1.msra.mxu0 0.0
    %184 = vmatprep.subr.mxu0 0.0
    %185 = vmatpush1.msra.mxu0 0.0
    %186 = vmatprep.subr.mxu0 0.0
    %187 = vmatpush1.msra.mxu0 0.0
    %188 = vmatprep.subr.mxu0 0.0
    %189 = vmatpush1.msra.mxu0 0.0
    %190 = vmatprep.subr.mxu0 0.0
    %191 = vmatpush1.msra.mxu0 0.0
    %192 = vmatprep.subr.mxu0 0.0
    %193 = vmatpush1.msra.mxu0 0.0
    %194 = vmatprep.subr.mxu0 0.0
    %195 = vmatpush1.msra.mxu0 0.0
    %196 = vmatprep.subr.mxu0 0.0
    %197 = vmatpush1.msra.mxu0 0.0
    %198 = vmatprep.subr.mxu0 0.0
    %199 = vmatpush1.msra.mxu0 0.0
    %200 = vmatprep.subr.mxu0 0.0
    %201 = vmatpush1.msra.mxu0 0.0
    %202 = vmatprep.subr.mxu0 0.0
    %203 = vmatpush1.msra.mxu0 0.0
    %204 = vmatprep.mubr.f32.mxu0 0.0
    %205 = vmatmul.mubr.f32.gmra.mrb[0].mxu0 %v135
    %v206 = vpop.f32.mrb[0].mxu0
    %v207 = vadd.f32 %v131, %v206
    %v208 = vpop.f32.mrb[0].mxu0
    %209 = vmatprep.mubr.f32.mxu0 0.0
    %210 = vmatmul.mubr.f32.gmra.mrb[0].mxu0 %v138
    %v211 = vpop.f32.mrb[0].mxu0
    %v212 = vadd.f32 %v131, %v211
    %v213 = vpop.f32.mrb[0].mxu0
    %214 = vdwg.mxu0
    %v215 = vmax.f32 %v207, 0.0
    %v216 = vmax.f32 %v212, 0.0
    %v217 = vld [vmem:[#allocation8] sm:$0xff]
    %v218 = vld [vmem:[#allocation8 + $0x8] sm:$0xff]
    %v219 = vld [vmem:[#allocation8 + $0x10] sm:$0xff]
    %v220 = vld [vmem:[#allocation8 + $0x18] sm:$0xff]
    %v221 = vld [vmem:[#allocation8 + $0x20] sm:$0xff]
    %v222 = vld [vmem:[#allocation8 + $0x28] sm:$0xff]
    %v223 = vld [vmem:[#allocation8 + $0x30] sm:$0xff]
    %v224 = vld [vmem:[#allocation8 + $0x38] sm:$0xff]
    %v225 = vld [vmem:[#allocation8 + $0x40] sm:$0xff]
    %v226 = vld [vmem:[#allocation8 + $0x48] sm:$0xff]
    %v227 = vld [vmem:[#allocation8 + $0x50] sm:$0xff]
    %v228 = vld [vmem:[#allocation8 + $0x58] sm:$0xff]
    %v229 = vld [vmem:[#allocation8 + $0x60] sm:$0xff]
    %v230 = vld [vmem:[#allocation8 + $0x68] sm:$0xff]
    %v231 = vld [vmem:[#allocation8 + $0x70] sm:$0xff]
    %v232 = vld [vmem:[#allocation8 + $0x78] sm:$0xff]
    %v233 = vld [vmem:[#allocation8 + $0x80] sm:$0xff]
    %v234 = vld [vmem:[#allocation8 + $0x88] sm:$0xff]
    %v235 = vld [vmem:[#allocation8 + $0x90] sm:$0xff]
    %v236 = vld [vmem:[#allocation8 + $0x98] sm:$0xff]
    %v237 = vld [vmem:[#allocation8 + $0xa0] sm:$0xff]
    %v238 = vld [vmem:[#allocation8 + $0xa8] sm:$0xff]
    %v239 = vld [vmem:[#allocation8 + $0xb0] sm:$0xff]
    %v240 = vld [vmem:[#allocation8 + $0xb8] sm:$0xff]
    %v241 = vld [vmem:[#allocation8 + $0xc0] sm:$0xff]
    %v242 = vld [vmem:[#allocation8 + $0xc8] sm:$0xff]
    %v243 = vld [vmem:[#allocation8 + $0xd0] sm:$0xff]
    %v244 = vld [vmem:[#allocation8 + $0xd8] sm:$0xff]
    %v245 = vld [vmem:[#allocation8 + $0xe0] sm:$0xff]
    %v246 = vld [vmem:[#allocation8 + $0xe8] sm:$0xff]
    %v247 = vld [vmem:[#allocation8 + $0xf0] sm:$0xff]
    %v248 = vld [vmem:[#allocation8 + $0xf8] sm:$0xff]
    %v249 = vld [vmem:[#allocation8 + $0x100] sm:$0xff]
    %v250 = vld [vmem:[#allocation8 + $0x108] sm:$0xff]
    %v251 = vld [vmem:[#allocation8 + $0x110] sm:$0xff]
    %v252 = vld [vmem:[#allocation8 + $0x118] sm:$0xff]
    %v253 = vld [vmem:[#allocation8 + $0x120] sm:$0xff]
    %v254 = vld [vmem:[#allocation8 + $0x128] sm:$0xff]
    %v255 = vld [vmem:[#allocation8 + $0x130] sm:$0xff]
    %v256 = vld [vmem:[#allocation8 + $0x138] sm:$0xff]
    %v257 = vld [vmem:[#allocation8 + $0x140] sm:$0xff]
    %v258 = vld [vmem:[#allocation8 + $0x148] sm:$0xff]
    %v259 = vld [vmem:[#allocation8 + $0x150] sm:$0xff]
    %v260 = vld [vmem:[#allocation8 + $0x158] sm:$0xff]
    %v261 = vld [vmem:[#allocation8 + $0x160] sm:$0xff]
    %v262 = vld [vmem:[#allocation8 + $0x168] sm:$0xff]
    %v263 = vld [vmem:[#allocation8 + $0x170] sm:$0xff]
    %v264 = vld [vmem:[#allocation8 + $0x178] sm:$0xff]
    %v265 = vld [vmem:[%s5] sm:$0x7]
    %v267 = vlaneseq
    %v268 = vshrl.u32 %v267, 7
    %v269 = vsub.s32 0, %v268
    %v270 = vrot.slane %v265, %v269
    %v271 = vlaneseq
    %v272 = vshrl.u32 %v271, 7
    %v273 = vsub.s32 1, %v272
    %v274 = vrot.slane %v265, %v273
    %v275 = vlaneseq
    %v276 = vshrl.u32 %v275, 7
    %v277 = vsub.s32 2, %v276
    %v278 = vrot.slane %v265, %v277
    %282 = vmatprep.subr.mxu0 %v218
    %283 = vmatpush1.msra.mxu0 %v217
    %284 = vmatprep.subr.mxu0 %v221
    %285 = vmatpush1.msra.mxu0 %v220
    %286 = vmatprep.subr.mxu0 %v224
    %287 = vmatpush1.msra.mxu0 %v223
    %288 = vmatprep.subr.mxu0 %v227
    %289 = vmatpush1.msra.mxu0 %v226
    %290 = vmatprep.subr.mxu0 %v230
    %291 = vmatpush1.msra.mxu0 %v229
    %292 = vmatprep.subr.mxu0 %v233
    %293 = vmatpush1.msra.mxu0 %v232
    %294 = vmatprep.subr.mxu0 %v236
    %295 = vmatpush1.msra.mxu0 %v235
    %296 = vmatprep.subr.mxu0 %v239
    %297 = vmatpush1.msra.mxu0 %v238
    %298 = vmatprep.subr.mxu0 %v242
    %299 = vmatpush1.msra.mxu0 %v241
    %300 = vmatprep.subr.mxu0 %v245
    %301 = vmatpush1.msra.mxu0 %v244
    %302 = vmatprep.subr.mxu0 %v248
    %303 = vmatpush1.msra.mxu0 %v247
    %304 = vmatprep.subr.mxu0 %v251
    %305 = vmatpush1.msra.mxu0 %v250
    %306 = vmatprep.subr.mxu0 %v254
    %307 = vmatpush1.msra.mxu0 %v253
    %308 = vmatprep.subr.mxu0 %v257
    %309 = vmatpush1.msra.mxu0 %v256
    %310 = vmatprep.subr.mxu0 %v260
    %311 = vmatpush1.msra.mxu0 %v259
    %312 = vmatprep.subr.mxu0 %v263
    %313 = vmatpush1.msra.mxu0 %v262
    %314 = vmatprep.subr.mxu0 0.0
    %315 = vmatpush1.msra.mxu0 0.0
    %316 = vmatprep.subr.mxu0 0.0
    %317 = vmatpush1.msra.mxu0 0.0
    %318 = vmatprep.subr.mxu0 0.0
    %319 = vmatpush1.msra.mxu0 0.0
    %320 = vmatprep.subr.mxu0 0.0
    %321 = vmatpush1.msra.mxu0 0.0
    %322 = vmatprep.subr.mxu0 0.0
    %323 = vmatpush1.msra.mxu0 0.0
    %324 = vmatprep.subr.mxu0 0.0
    %325 = vmatpush1.msra.mxu0 0.0
    %326 = vmatprep.subr.mxu0 0.0
    %327 = vmatpush1.msra.mxu0 0.0
    %328 = vmatprep.subr.mxu0 0.0
    %329 = vmatpush1.msra.mxu0 0.0
    %330 = vmatprep.subr.mxu0 0.0
    %331 = vmatpush1.msra.mxu0 0.0
    %332 = vmatprep.subr.mxu0 0.0
    %333 = vmatpush1.msra.mxu0 0.0
    %334 = vmatprep.subr.mxu0 0.0
    %335 = vmatpush1.msra.mxu0 0.0
    %336 = vmatprep.subr.mxu0 0.0
    %337 = vmatpush1.msra.mxu0 0.0
    %338 = vmatprep.subr.mxu0 0.0
    %339 = vmatpush1.msra.mxu0 0.0
    %340 = vmatprep.subr.mxu0 0.0
    %341 = vmatpush1.msra.mxu0 0.0
    %342 = vmatprep.subr.mxu0 0.0
    %343 = vmatpush1.msra.mxu0 0.0
    %344 = vmatprep.subr.mxu0 0.0
    %345 = vmatpush1.msra.mxu0 0.0
    %346 = vmatprep.mubr.f32.mxu0 0.0
    %347 = vmatmul.mubr.f32.gmra.mrb[0].mxu0 %v215
    %v348 = vpop.f32.mrb[0].mxu0
    %v349 = vadd.f32 %v270, %v348
    %v350 = vpop.f32.mrb[0].mxu0
    %v351 = vadd.f32 %v274, %v350
    %352 = vmatprep.mubr.f32.mxu0 0.0
    %353 = vmatmul.mubr.f32.gmra.mrb[0].mxu0 %v216
    %v354 = vpop.f32.mrb[0].mxu0
    %v355 = vadd.f32 %v270, %v354
    %v356 = vpop.f32.mrb[0].mxu0
    %v357 = vadd.f32 %v274, %v356
    %358 = vdwg.mxu0
    %359 = vmatprep.subr.mxu0 0.0
    %360 = vmatpush1.msra.mxu0 %v219
    %361 = vmatprep.subr.mxu0 0.0
    %362 = vmatpush1.msra.mxu0 %v222
    %363 = vmatprep.subr.mxu0 0.0
    %364 = vmatpush1.msra.mxu0 %v225
    %365 = vmatprep.subr.mxu0 0.0
    %366 = vmatpush1.msra.mxu0 %v228
    %367 = vmatprep.subr.mxu0 0.0
    %368 = vmatpush1.msra.mxu0 %v231
    %369 = vmatprep.subr.mxu0 0.0
    %370 = vmatpush1.msra.mxu0 %v234
    %371 = vmatprep.subr.mxu0 0.0
    %372 = vmatpush1.msra.mxu0 %v237
    %373 = vmatprep.subr.mxu0 0.0
    %374 = vmatpush1.msra.mxu0 %v240
    %375 = vmatprep.subr.mxu0 0.0
    %376 = vmatpush1.msra.mxu0 %v243
    %377 = vmatprep.subr.mxu0 0.0
    %378 = vmatpush1.msra.mxu0 %v246
    %379 = vmatprep.subr.mxu0 0.0
    %380 = vmatpush1.msra.mxu0 %v249
    %381 = vmatprep.subr.mxu0 0.0
    %382 = vmatpush1.msra.mxu0 %v252
    %383 = vmatprep.subr.mxu0 0.0
    %384 = vmatpush1.msra.mxu0 %v255
    %385 = vmatprep.subr.mxu0 0.0
    %386 = vmatpush1.msra.mxu0 %v258
    %387 = vmatprep.subr.mxu0 0.0
    %388 = vmatpush1.msra.mxu0 %v261
    %389 = vmatprep.subr.mxu0 0.0
    %390 = vmatpush1.msra.mxu0 %v264
    %391 = vmatprep.subr.mxu0 0.0
    %392 = vmatpush1.msra.mxu0 0.0
    %393 = vmatprep.subr.mxu0 0.0
    %394 = vmatpush1.msra.mxu0 0.0
    %395 = vmatprep.subr.mxu0 0.0
    %396 = vmatpush1.msra.mxu0 0.0
    %397 = vmatprep.subr.mxu0 0.0
    %398 = vmatpush1.msra.mxu0 0.0
    %399 = vmatprep.subr.mxu0 0.0
    %400 = vmatpush1.msra.mxu0 0.0
    %401 = vmatprep.subr.mxu0 0.0
    %402 = vmatpush1.msra.mxu0 0.0
    %403 = vmatprep.subr.mxu0 0.0
    %404 = vmatpush1.msra.mxu0 0.0
    %405 = vmatprep.subr.mxu0 0.0
    %406 = vmatpush1.msra.mxu0 0.0
    %407 = vmatprep.subr.mxu0 0.0
    %408 = vmatpush1.msra.mxu0 0.0
    %409 = vmatprep.subr.mxu0 0.0
    %410 = vmatpush1.msra.mxu0 0.0
    %411 = vmatprep.subr.mxu0 0.0
    %412 = vmatpush1.msra.mxu0 0.0
    %413 = vmatprep.subr.mxu0 0.0
    %414 = vmatpush1.msra.mxu0 0.0
    %415 = vmatprep.subr.mxu0 0.0
    %416 = vmatpush1.msra.mxu0 0.0
    %417 = vmatprep.subr.mxu0 0.0
    %418 = vmatpush1.msra.mxu0 0.0
    %419 = vmatprep.subr.mxu0 0.0
    %420 = vmatpush1.msra.mxu0 0.0
    %421 = vmatprep.subr.mxu0 0.0
    %422 = vmatpush1.msra.mxu0 0.0
    %423 = vmatprep.mubr.f32.mxu0 0.0
    %424 = vmatmul.mubr.f32.gmra.mrb[0].mxu0 %v215
    %v425 = vpop.f32.mrb[0].mxu0
    %v426 = vadd.f32 %v278, %v425
    %v427 = vpop.f32.mrb[0].mxu0
    %428 = vmatprep.mubr.f32.mxu0 0.0
    %429 = vmatmul.mubr.f32.gmra.mrb[0].mxu0 %v216
    %v430 = vpop.f32.mrb[0].mxu0
    %v431 = vadd.f32 %v278, %v430
    %v432 = vpop.f32.mrb[0].mxu0
    %433 = vdwg.mxu0
    %v434 = vmax.f32 %v349, 0.0
    %v435 = vmax.f32 %v351, 0.0
    %v436 = vmax.f32 %v426, 0.0
    %v437 = vmax.f32 %v355, 0.0
    %v438 = vmax.f32 %v357, 0.0
    %v439 = vmax.f32 %v431, 0.0
    %440 = vmatprep.subr.mxu0 0.0
    %441 = vmatpush1.xpose.msra.mxu0 %v436
    %442 = vmatprep.subr.mxu0 0.0
    %443 = vmatpush1.xpose.msra.mxu0 0.0
    %444 = vmatprep.subr.mxu0 0.0
    %445 = vmatpush1.xpose.msra.mxu0 0.0
    %446 = vmatprep.subr.mxu0 0.0
    %447 = vmatpush1.xpose.msra.mxu0 0.0
    %448 = vmatprep.subr.mxu0 0.0
    %449 = vmatpush1.xpose.msra.mxu0 0.0
    %450 = vmatprep.subr.mxu0 0.0
    %451 = vmatpush1.xpose.msra.mxu0 0.0
    %452 = vmatprep.subr.mxu0 0.0
    %453 = vmatpush1.xpose.msra.mxu0 0.0
    %454 = vmatprep.subr.mxu0 0.0
    %455 = vmatpush1.xpose.msra.mxu0 0.0
    %456 = vmatprep.subr.mxu0 0.0
    %457 = vmatpush1.xpose.msra.mxu0 0.0
    %458 = vmatprep.subr.mxu0 0.0
    %459 = vmatpush1.xpose.msra.mxu0 0.0
    %460 = vmatprep.subr.mxu0 0.0
    %461 = vmatpush1.xpose.msra.mxu0 0.0
    %462 = vmatprep.subr.mxu0 0.0
    %463 = vmatpush1.xpose.msra.mxu0 0.0
    %464 = vmatprep.subr.mxu0 0.0
    %465 = vmatpush1.xpose.msra.mxu0 0.0
    %466 = vmatprep.subr.mxu0 0.0
    %467 = vmatpush1.xpose.msra.mxu0 0.0
    %468 = vmatprep.subr.mxu0 0.0
    %469 = vmatpush1.xpose.msra.mxu0 0.0
    %470 = vmatprep.subr.mxu0 0.0
    %471 = vmatpush1.xpose.msra.mxu0 0.0
    %472 = vmatprep.subr.mxu0 0.0
    %473 = vmatpush1.xpose.msra.mxu0 0.0
    %474 = vmatprep.subr.mxu0 0.0
    %475 = vmatpush1.xpose.msra.mxu0 0.0
    %476 = vmatprep.subr.mxu0 0.0
    %477 = vmatpush1.xpose.msra.mxu0 0.0
    %478 = vmatprep.subr.mxu0 0.0
    %479 = vmatpush1.xpose.msra.mxu0 0.0
    %480 = vmatprep.subr.mxu0 0.0
    %481 = vmatpush1.xpose.msra.mxu0 0.0
    %482 = vmatprep.subr.mxu0 0.0
    %483 = vmatpush1.xpose.msra.mxu0 0.0
    %484 = vmatprep.subr.mxu0 0.0
    %485 = vmatpush1.xpose.msra.mxu0 0.0
    %486 = vmatprep.subr.mxu0 0.0
    %487 = vmatpush1.xpose.msra.mxu0 0.0
    %488 = vmatprep.subr.mxu0 0.0
    %489 = vmatpush1.xpose.msra.mxu0 0.0
    %490 = vmatprep.subr.mxu0 0.0
    %491 = vmatpush1.xpose.msra.mxu0 0.0
    %492 = vmatprep.subr.mxu0 0.0
    %493 = vmatpush1.xpose.msra.mxu0 0.0
    %494 = vmatprep.subr.mxu0 0.0
    %495 = vmatpush1.xpose.msra.mxu0 0.0
    %496 = vmatprep.subr.mxu0 0.0
    %497 = vmatpush1.xpose.msra.mxu0 0.0
    %498 = vmatprep.subr.mxu0 0.0
    %499 = vmatpush1.xpose.msra.mxu0 0.0
    %500 = vmatprep.subr.mxu0 0.0
    %501 = vmatpush1.xpose.msra.mxu0 0.0
    %502 = vmatprep.subr.mxu0 0.0
    %503 = vmatpush1.xpose.msra.mxu0 0.0
    %504 = vmatprep.mubr.f32.mxu0 0.0
    %505 = vmatmul.mubr.f32.gmra.mrb[0].mxu0 %v435
    %v506 = vpop.f32.mrb[0].mxu0
    %v507 = vadd.f32 0.0, %v506
    %v508 = vpop.f32.mrb[0].mxu0
    %509 = vdwg.mxu0
    %510 = vmatprep.subr.mxu0 0.0
    %511 = vmatpush1.xpose.msra.mxu0 %v439
    %512 = vmatprep.subr.mxu0 0.0
    %513 = vmatpush1.xpose.msra.mxu0 0.0
    %514 = vmatprep.subr.mxu0 0.0
    %515 = vmatpush1.xpose.msra.mxu0 0.0
    %516 = vmatprep.subr.mxu0 0.0
    %517 = vmatpush1.xpose.msra.mxu0 0.0
    %518 = vmatprep.subr.mxu0 0.0
    %519 = vmatpush1.xpose.msra.mxu0 0.0
    %520 = vmatprep.subr.mxu0 0.0
    %521 = vmatpush1.xpose.msra.mxu0 0.0
    %522 = vmatprep.subr.mxu0 0.0
    %523 = vmatpush1.xpose.msra.mxu0 0.0
    %524 = vmatprep.subr.mxu0 0.0
    %525 = vmatpush1.xpose.msra.mxu0 0.0
    %526 = vmatprep.subr.mxu0 0.0
    %527 = vmatpush1.xpose.msra.mxu0 0.0
    %528 = vmatprep.subr.mxu0 0.0
    %529 = vmatpush1.xpose.msra.mxu0 0.0
    %530 = vmatprep.subr.mxu0 0.0
    %531 = vmatpush1.xpose.msra.mxu0 0.0
    %532 = vmatprep.subr.mxu0 0.0
    %533 = vmatpush1.xpose.msra.mxu0 0.0
    %534 = vmatprep.subr.mxu0 0.0
    %535 = vmatpush1.xpose.msra.mxu0 0.0
    %536 = vmatprep.subr.mxu0 0.0
    %537 = vmatpush1.xpose.msra.mxu0 0.0
    %538 = vmatprep.subr.mxu0 0.0
    %539 = vmatpush1.xpose.msra.mxu0 0.0
    %540 = vmatprep.subr.mxu0 0.0
    %541 = vmatpush1.xpose.msra.mxu0 0.0
    %542 = vmatprep.subr.mxu0 0.0
    %543 = vmatpush1.xpose.msra.mxu0 0.0
    %544 = vmatprep.subr.mxu0 0.0
    %545 = vmatpush1.xpose.msra.mxu0 0.0
    %546 = vmatprep.subr.mxu0 0.0
    %547 = vmatpush1.xpose.msra.mxu0 0.0
    %548 = vmatprep.subr.mxu0 0.0
    %549 = vmatpush1.xpose.msra.mxu0 0.0
    %550 = vmatprep.subr.mxu0 0.0
    %551 = vmatpush1.xpose.msra.mxu0 0.0
    %552 = vmatprep.subr.mxu0 0.0
    %553 = vmatpush1.xpose.msra.mxu0 0.0
    %554 = vmatprep.subr.mxu0 0.0
    %555 = vmatpush1.xpose.msra.mxu0 0.0
    %556 = vmatprep.subr.mxu0 0.0
    %557 = vmatpush1.xpose.msra.mxu0 0.0
    %558 = vmatprep.subr.mxu0 0.0
    %559 = vmatpush1.xpose.msra.mxu0 0.0
    %560 = vmatprep.subr.mxu0 0.0
    %561 = vmatpush1.xpose.msra.mxu0 0.0
    %562 = vmatprep.subr.mxu0 0.0
    %563 = vmatpush1.xpose.msra.mxu0 0.0
    %564 = vmatprep.subr.mxu0 0.0
    %565 = vmatpush1.xpose.msra.mxu0 0.0
    %566 = vmatprep.subr.mxu0 0.0
    %567 = vmatpush1.xpose.msra.mxu0 0.0
    %568 = vmatprep.subr.mxu0 0.0
    %569 = vmatpush1.xpose.msra.mxu0 0.0
    %570 = vmatprep.subr.mxu0 0.0
    %571 = vmatpush1.xpose.msra.mxu0 0.0
    %572 = vmatprep.subr.mxu0 0.0
    %573 = vmatpush1.xpose.msra.mxu0 0.0
    %574 = vmatprep.mubr.f32.mxu0 0.0
    %575 = vmatmul.mubr.f32.gmra.mrb[0].mxu0 %v438
    %v576 = vpop.f32.mrb[0].mxu0
    %v577 = vadd.f32 0.0, %v576
    %v578 = vpop.f32.mrb[0].mxu0
    %579 = vdwg.mxu0
    %v580 = vmul.f32 %v507, %v120
    %v581 = vmul.f32 %v577, %v121
    %v582 = vsub.f32 1.0, %v120
    %v583 = vsub.f32 1.0, %v121
    %v584 = vmul.f32 %v582, 9e+15
    %v585 = vmul.f32 %v583, 9e+15
    %v586 = vsub.f32 %v580, %v584
    %v587 = vsub.f32 %v581, %v585
    %vm588 = vcmask 64512
    %v589 = vsel %vm588, %v586, -inf
    %590 = vmax.xlane.f32.xlu0 %v589
    %v591 = vpop.xlane.xlu0 %590
    %v592 = vsel %vm588, %v587, -inf
    %593 = vmax.xlane.f32.xlu0 %v592
    %v594 = vpop.xlane.xlu0 %593
    %v595 = vsub.f32 %v586, %v591
    %v596 = vsub.f32 %v587, %v594
    %v597 = vmul.f32 %v595, 1.442695
    %v598 = vpow.pop %v597
    %v599 = vmul.f32 %v596, 1.442695
    %v600 = vpow.pop %v599
    %v601 = vsel %vm588, %v598, 0.0
    %602 = vadd.xlane.f32.xlu0 %v601
    %v603 = vpop.xlane.xlu0 %602
    %v604 = vsel %vm588, %v600, 0.0
    %605 = vadd.xlane.f32.xlu0 %v604
    %v606 = vpop.xlane.xlu0 %605
    %v607 = vrcp.pop %v603
    %v608 = vmul.f32 %v598, %v607
    %v609 = vrcp.pop %v606
    %v610 = vmul.f32 %v600, %v609
    %v612 = vsel %vm588, %v608, 0
    %614 = vmatprep.subr.mxu0 0.0
    %615 = vmatpush1.msra.mxu0 %v434
    %616 = vmatprep.subr.mxu0 0.0
    %617 = vmatpush1.msra.mxu0 0.0
    %618 = vmatprep.subr.mxu0 0.0
    %619 = vmatpush1.msra.mxu0 0.0
    %620 = vmatprep.subr.mxu0 0.0
    %621 = vmatpush1.msra.mxu0 0.0
    %622 = vmatprep.subr.mxu0 0.0
    %623 = vmatpush1.msra.mxu0 0.0
    %624 = vmatprep.subr.mxu0 0.0
    %625 = vmatpush1.msra.mxu0 0.0
    %626 = vmatprep.subr.mxu0 0.0
    %627 = vmatpush1.msra.mxu0 0.0
    %628 = vmatprep.subr.mxu0 0.0
    %629 = vmatpush1.msra.mxu0 0.0
    %630 = vmatprep.subr.mxu0 0.0
    %631 = vmatpush1.msra.mxu0 0.0
    %632 = vmatprep.subr.mxu0 0.0
    %633 = vmatpush1.msra.mxu0 0.0
    %634 = vmatprep.subr.mxu0 0.0
    %635 = vmatpush1.msra.mxu0 0.0
    %636 = vmatprep.subr.mxu0 0.0
    %637 = vmatpush1.msra.mxu0 0.0
    %638 = vmatprep.subr.mxu0 0.0
    %639 = vmatpush1.msra.mxu0 0.0
    %640 = vmatprep.subr.mxu0 0.0
    %641 = vmatpush1.msra.mxu0 0.0
    %642 = vmatprep.subr.mxu0 0.0
    %643 = vmatpush1.msra.mxu0 0.0
    %644 = vmatprep.subr.mxu0 0.0
    %645 = vmatpush1.msra.mxu0 0.0
    %646 = vmatprep.subr.mxu0 0.0
    %647 = vmatpush1.msra.mxu0 0.0
    %648 = vmatprep.subr.mxu0 0.0
    %649 = vmatpush1.msra.mxu0 0.0
    %650 = vmatprep.subr.mxu0 0.0
    %651 = vmatpush1.msra.mxu0 0.0
    %652 = vmatprep.subr.mxu0 0.0
    %653 = vmatpush1.msra.mxu0 0.0
    %654 = vmatprep.subr.mxu0 0.0
    %655 = vmatpush1.msra.mxu0 0.0
    %656 = vmatprep.subr.mxu0 0.0
    %657 = vmatpush1.msra.mxu0 0.0
    %658 = vmatprep.subr.mxu0 0.0
    %659 = vmatpush1.msra.mxu0 0.0
    %660 = vmatprep.subr.mxu0 0.0
    %661 = vmatpush1.msra.mxu0 0.0
    %662 = vmatprep.subr.mxu0 0.0
    %663 = vmatpush1.msra.mxu0 0.0
    %664 = vmatprep.subr.mxu0 0.0
    %665 = vmatpush1.msra.mxu0 0.0
    %666 = vmatprep.subr.mxu0 0.0
    %667 = vmatpush1.msra.mxu0 0.0
    %668 = vmatprep.subr.mxu0 0.0
    %669 = vmatpush1.msra.mxu0 0.0
    %670 = vmatprep.subr.mxu0 0.0
    %671 = vmatpush1.msra.mxu0 0.0
    %672 = vmatprep.subr.mxu0 0.0
    %673 = vmatpush1.msra.mxu0 0.0
    %674 = vmatprep.subr.mxu0 0.0
    %675 = vmatpush1.msra.mxu0 0.0
    %676 = vmatprep.subr.mxu0 0.0
    %677 = vmatpush1.msra.mxu0 0.0
    %678 = vmatprep.mubr.f32.mxu0 0.0
    %679 = vmatmul.mubr.f32.gmra.mrb[0].mxu0 %v612
    %v680 = vpop.f32.mrb[0].mxu0
    %v681 = vadd.f32 0.0, %v680
    %v682 = vpop.f32.mrb[0].mxu0
    %683 = vdwg.mxu0
    %v685 = vsel %vm588, %v610, 0
    %687 = vmatprep.subr.mxu0 0.0
    %688 = vmatpush1.msra.mxu0 %v437
    %689 = vmatprep.subr.mxu0 0.0
    %690 = vmatpush1.msra.mxu0 0.0
    %691 = vmatprep.subr.mxu0 0.0
    %692 = vmatpush1.msra.mxu0 0.0
    %693 = vmatprep.subr.mxu0 0.0
    %694 = vmatpush1.msra.mxu0 0.0
    %695 = vmatprep.subr.mxu0 0.0
    %696 = vmatpush1.msra.mxu0 0.0
    %697 = vmatprep.subr.mxu0 0.0
    %698 = vmatpush1.msra.mxu0 0.0
    %699 = vmatprep.subr.mxu0 0.0
    %700 = vmatpush1.msra.mxu0 0.0
    %701 = vmatprep.subr.mxu0 0.0
    %702 = vmatpush1.msra.mxu0 0.0
    %703 = vmatprep.subr.mxu0 0.0
    %704 = vmatpush1.msra.mxu0 0.0
    %705 = vmatprep.subr.mxu0 0.0
    %706 = vmatpush1.msra.mxu0 0.0
    %707 = vmatprep.subr.mxu0 0.0
    %708 = vmatpush1.msra.mxu0 0.0
    %709 = vmatprep.subr.mxu0 0.0
    %710 = vmatpush1.msra.mxu0 0.0
    %711 = vmatprep.subr.mxu0 0.0
    %712 = vmatpush1.msra.mxu0 0.0
    %713 = vmatprep.subr.mxu0 0.0
    %714 = vmatpush1.msra.mxu0 0.0
    %715 = vmatprep.subr.mxu0 0.0
    %716 = vmatpush1.msra.mxu0 0.0
    %717 = vmatprep.subr.mxu0 0.0
    %718 = vmatpush1.msra.mxu0 0.0
    %719 = vmatprep.subr.mxu0 0.0
    %720 = vmatpush1.msra.mxu0 0.0
    %721 = vmatprep.subr.mxu0 0.0
    %722 = vmatpush1.msra.mxu0 0.0
    %723 = vmatprep.subr.mxu0 0.0
    %724 = vmatpush1.msra.mxu0 0.0
    %725 = vmatprep.subr.mxu0 0.0
    %726 = vmatpush1.msra.mxu0 0.0
    %727 = vmatprep.subr.mxu0 0.0
    %728 = vmatpush1.msra.mxu0 0.0
    %729 = vmatprep.subr.mxu0 0.0
    %730 = vmatpush1.msra.mxu0 0.0
    %731 = vmatprep.subr.mxu0 0.0
    %732 = vmatpush1.msra.mxu0 0.0
    %733 = vmatprep.subr.mxu0 0.0
    %734 = vmatpush1.msra.mxu0 0.0
    %735 = vmatprep.subr.mxu0 0.0
    %736 = vmatpush1.msra.mxu0 0.0
    %737 = vmatprep.subr.mxu0 0.0
    %738 = vmatpush1.msra.mxu0 0.0
    %739 = vmatprep.subr.mxu0 0.0
    %740 = vmatpush1.msra.mxu0 0.0
    %741 = vmatprep.subr.mxu0 0.0
    %742 = vmatpush1.msra.mxu0 0.0
    %743 = vmatprep.subr.mxu0 0.0
    %744 = vmatpush1.msra.mxu0 0.0
    %745 = vmatprep.subr.mxu0 0.0
    %746 = vmatpush1.msra.mxu0 0.0
    %747 = vmatprep.subr.mxu0 0.0
    %748 = vmatpush1.msra.mxu0 0.0
    %749 = vmatprep.subr.mxu0 0.0
    %750 = vmatpush1.msra.mxu0 0.0
    %751 = vmatprep.mubr.f32.mxu0 0.0
    %752 = vmatmul.mubr.f32.gmra.mrb[0].mxu0 %v685
    %v753 = vpop.f32.mrb[0].mxu0
    %v754 = vadd.f32 0.0, %v753
    %v755 = vpop.f32.mrb[0].mxu0
    %756 = vdwg.mxu0
    %v757 = vld [vmem:[#allocation10] sm:$0xff]
    %v758 = vld [vmem:[#allocation10 + $0x8] sm:$0xff]
    %v759 = vld [vmem:[#allocation10 + $0x10] sm:$0xff]
    %v760 = vld [vmem:[#allocation10 + $0x18] sm:$0xff]
    %v761 = vld [vmem:[#allocation10 + $0x20] sm:$0xff]
    %v762 = vld [vmem:[#allocation10 + $0x28] sm:$0xff]
    %v763 = vld [vmem:[#allocation10 + $0x30] sm:$0xff]
    %v764 = vld [vmem:[#allocation10 + $0x38] sm:$0xff]
    %v765 = vld [vmem:[#allocation10 + $0x40] sm:$0xff]
    %v766 = vld [vmem:[#allocation10 + $0x48] sm:$0xff]
    %v767 = vld [vmem:[#allocation10 + $0x50] sm:$0xff]
    %v768 = vld [vmem:[#allocation10 + $0x58] sm:$0xff]
    %v769 = vld [vmem:[#allocation10 + $0x60] sm:$0xff]
    %v770 = vld [vmem:[#allocation10 + $0x68] sm:$0xff]
    %v771 = vld [vmem:[#allocation10 + $0x70] sm:$0xff]
    %v772 = vld [vmem:[#allocation10 + $0x78] sm:$0xff]
    %v773 = vld [vmem:[%s7] sm:$0x1]
    %v775 = vlaneseq
    %v776 = vshrl.u32 %v775, 7
    %v777 = vsub.s32 0, %v776
    %v778 = vrot.slane %v773, %v777
    %780 = vmatprep.subr.mxu0 0.0
    %781 = vmatpush1.msra.mxu0 %v757
    %782 = vmatprep.subr.mxu0 0.0
    %783 = vmatpush1.msra.mxu0 %v758
    %784 = vmatprep.subr.mxu0 0.0
    %785 = vmatpush1.msra.mxu0 %v759
    %786 = vmatprep.subr.mxu0 0.0
    %787 = vmatpush1.msra.mxu0 %v760
    %788 = vmatprep.subr.mxu0 0.0
    %789 = vmatpush1.msra.mxu0 %v761
    %790 = vmatprep.subr.mxu0 0.0
    %791 = vmatpush1.msra.mxu0 %v762
    %792 = vmatprep.subr.mxu0 0.0
    %793 = vmatpush1.msra.mxu0 %v763
    %794 = vmatprep.subr.mxu0 0.0
    %795 = vmatpush1.msra.mxu0 %v764
    %796 = vmatprep.subr.mxu0 0.0
    %797 = vmatpush1.msra.mxu0 %v765
    %798 = vmatprep.subr.mxu0 0.0
    %799 = vmatpush1.msra.mxu0 %v766
    %800 = vmatprep.subr.mxu0 0.0
    %801 = vmatpush1.msra.mxu0 %v767
    %802 = vmatprep.subr.mxu0 0.0
    %803 = vmatpush1.msra.mxu0 %v768
    %804 = vmatprep.subr.mxu0 0.0
    %805 = vmatpush1.msra.mxu0 %v769
    %806 = vmatprep.subr.mxu0 0.0
    %807 = vmatpush1.msra.mxu0 %v770
    %808 = vmatprep.subr.mxu0 0.0
    %809 = vmatpush1.msra.mxu0 %v771
    %810 = vmatprep.subr.mxu0 0.0
    %811 = vmatpush1.msra.mxu0 %v772
    %812 = vmatprep.subr.mxu0 0.0
    %813 = vmatpush1.msra.mxu0 0.0
    %814 = vmatprep.subr.mxu0 0.0
    %815 = vmatpush1.msra.mxu0 0.0
    %816 = vmatprep.subr.mxu0 0.0
    %817 = vmatpush1.msra.mxu0 0.0
    %818 = vmatprep.subr.mxu0 0.0
    %819 = vmatpush1.msra.mxu0 0.0
    %820 = vmatprep.subr.mxu0 0.0
    %821 = vmatpush1.msra.mxu0 0.0
    %822 = vmatprep.subr.mxu0 0.0
    %823 = vmatpush1.msra.mxu0 0.0
    %824 = vmatprep.subr.mxu0 0.0
    %825 = vmatpush1.msra.mxu0 0.0
    %826 = vmatprep.subr.mxu0 0.0
    %827 = vmatpush1.msra.mxu0 0.0
    %828 = vmatprep.subr.mxu0 0.0
    %829 = vmatpush1.msra.mxu0 0.0
    %830 = vmatprep.subr.mxu0 0.0
    %831 = vmatpush1.msra.mxu0 0.0
    %832 = vmatprep.subr.mxu0 0.0
    %833 = vmatpush1.msra.mxu0 0.0
    %834 = vmatprep.subr.mxu0 0.0
    %835 = vmatpush1.msra.mxu0 0.0
    %836 = vmatprep.subr.mxu0 0.0
    %837 = vmatpush1.msra.mxu0 0.0
    %838 = vmatprep.subr.mxu0 0.0
    %839 = vmatpush1.msra.mxu0 0.0
    %840 = vmatprep.subr.mxu0 0.0
    %841 = vmatpush1.msra.mxu0 0.0
    %842 = vmatprep.subr.mxu0 0.0
    %843 = vmatpush1.msra.mxu0 0.0
    %844 = vmatprep.mubr.f32.mxu0 0.0
    %845 = vmatmul.mubr.f32.gmra.mrb[0].mxu0 %v681
    %v846 = vpop.f32.mrb[0].mxu0
    %v847 = vadd.f32 %v778, %v846
    %v848 = vpop.f32.mrb[0].mxu0
    %849 = vmatprep.mubr.f32.mxu0 0.0
    %850 = vmatmul.mubr.f32.gmra.mrb[0].mxu0 %v754
    %v851 = vpop.f32.mrb[0].mxu0
    %v852 = vadd.f32 %v778, %v851
    %v853 = vpop.f32.mrb[0].mxu0
    %854 = vdwg.mxu0
    %v855 = vmax.f32 %v847, 0.0
    %v856 = vmax.f32 %v852, 0.0
    %s857 = scalar_lea.vmem [#allocation8], 384
    %v858 = vld [vmem:[%s857] sm:$0xff]
    %v859 = vld [vmem:[%s857 + $0x8] sm:$0xff]
    %v860 = vld [vmem:[%s857 + $0x10] sm:$0xff]
    %v861 = vld [vmem:[%s857 + $0x18] sm:$0xff]
    %v862 = vld [vmem:[%s857 + $0x20] sm:$0xff]
    %v863 = vld [vmem:[%s857 + $0x28] sm:$0xff]
    %v864 = vld [vmem:[%s857 + $0x30] sm:$0xff]
    %v865 = vld [vmem:[%s857 + $0x38] sm:$0xff]
    %v866 = vld [vmem:[%s857 + $0x40] sm:$0xff]
    %v867 = vld [vmem:[%s857 + $0x48] sm:$0xff]
    %v868 = vld [vmem:[%s857 + $0x50] sm:$0xff]
    %v869 = vld [vmem:[%s857 + $0x58] sm:$0xff]
    %v870 = vld [vmem:[%s857 + $0x60] sm:$0xff]
    %v871 = vld [vmem:[%s857 + $0x68] sm:$0xff]
    %v872 = vld [vmem:[%s857 + $0x70] sm:$0xff]
    %v873 = vld [vmem:[%s857 + $0x78] sm:$0xff]
    %v874 = vld [vmem:[%s857 + $0x80] sm:$0xff]
    %v875 = vld [vmem:[%s857 + $0x88] sm:$0xff]
    %v876 = vld [vmem:[%s857 + $0x90] sm:$0xff]
    %v877 = vld [vmem:[%s857 + $0x98] sm:$0xff]
    %v878 = vld [vmem:[%s857 + $0xa0] sm:$0xff]
    %v879 = vld [vmem:[%s857 + $0xa8] sm:$0xff]
    %v880 = vld [vmem:[%s857 + $0xb0] sm:$0xff]
    %v881 = vld [vmem:[%s857 + $0xb8] sm:$0xff]
    %v882 = vld [vmem:[%s857 + $0xc0] sm:$0xff]
    %v883 = vld [vmem:[%s857 + $0xc8] sm:$0xff]
    %v884 = vld [vmem:[%s857 + $0xd0] sm:$0xff]
    %v885 = vld [vmem:[%s857 + $0xd8] sm:$0xff]
    %v886 = vld [vmem:[%s857 + $0xe0] sm:$0xff]
    %v887 = vld [vmem:[%s857 + $0xe8] sm:$0xff]
    %v888 = vld [vmem:[%s857 + $0xf0] sm:$0xff]
    %v889 = vld [vmem:[%s857 + $0xf8] sm:$0xff]
    %v890 = vld [vmem:[%s857 + $0x100] sm:$0xff]
    %v891 = vld [vmem:[%s857 + $0x108] sm:$0xff]
    %v892 = vld [vmem:[%s857 + $0x110] sm:$0xff]
    %v893 = vld [vmem:[%s857 + $0x118] sm:$0xff]
    %v894 = vld [vmem:[%s857 + $0x120] sm:$0xff]
    %v895 = vld [vmem:[%s857 + $0x128] sm:$0xff]
    %v896 = vld [vmem:[%s857 + $0x130] sm:$0xff]
    %v897 = vld [vmem:[%s857 + $0x138] sm:$0xff]
    %v898 = vld [vmem:[%s857 + $0x140] sm:$0xff]
    %v899 = vld [vmem:[%s857 + $0x148] sm:$0xff]
    %v900 = vld [vmem:[%s857 + $0x150] sm:$0xff]
    %v901 = vld [vmem:[%s857 + $0x158] sm:$0xff]
    %v902 = vld [vmem:[%s857 + $0x160] sm:$0xff]
    %v903 = vld [vmem:[%s857 + $0x168] sm:$0xff]
    %v904 = vld [vmem:[%s857 + $0x170] sm:$0xff]
    %v905 = vld [vmem:[%s857 + $0x178] sm:$0xff]
    %s906 = scalar_lea.vmem %s5, 3
    %v907 = vld [vmem:[%s906] sm:$0x7]
    %v909 = vlaneseq
    %v910 = vshrl.u32 %v909, 7
    %v911 = vsub.s32 0, %v910
    %v912 = vrot.slane %v907, %v911
    %v913 = vlaneseq
    %v914 = vshrl.u32 %v913, 7
    %v915 = vsub.s32 1, %v914
    %v916 = vrot.slane %v907, %v915
    %v917 = vlaneseq
    %v918 = vshrl.u32 %v917, 7
    %v919 = vsub.s32 2, %v918
    %v920 = vrot.slane %v907, %v919
    %924 = vmatprep.subr.mxu0 %v859
    %925 = vmatpush1.msra.mxu0 %v858
    %926 = vmatprep.subr.mxu0 %v862
    %927 = vmatpush1.msra.mxu0 %v861
    %928 = vmatprep.subr.mxu0 %v865
    %929 = vmatpush1.msra.mxu0 %v864
    %930 = vmatprep.subr.mxu0 %v868
    %931 = vmatpush1.msra.mxu0 %v867
    %932 = vmatprep.subr.mxu0 %v871
    %933 = vmatpush1.msra.mxu0 %v870
    %934 = vmatprep.subr.mxu0 %v874
    %935 = vmatpush1.msra.mxu0 %v873
    %936 = vmatprep.subr.mxu0 %v877
    %937 = vmatpush1.msra.mxu0 %v876
    %938 = vmatprep.subr.mxu0 %v880
    %939 = vmatpush1.msra.mxu0 %v879
    %940 = vmatprep.subr.mxu0 %v883
    %941 = vmatpush1.msra.mxu0 %v882
    %942 = vmatprep.subr.mxu0 %v886
    %943 = vmatpush1.msra.mxu0 %v885
    %944 = vmatprep.subr.mxu0 %v889
    %945 = vmatpush1.msra.mxu0 %v888
    %946 = vmatprep.subr.mxu0 %v892
    %947 = vmatpush1.msra.mxu0 %v891
    %948 = vmatprep.subr.mxu0 %v895
    %949 = vmatpush1.msra.mxu0 %v894
    %950 = vmatprep.subr.mxu0 %v898
    %951 = vmatpush1.msra.mxu0 %v897
    %952 = vmatprep.subr.mxu0 %v901
    %953 = vmatpush1.msra.mxu0 %v900
    %954 = vmatprep.subr.mxu0 %v904
    %955 = vmatpush1.msra.mxu0 %v903
    %956 = vmatprep.subr.mxu0 0.0
    %957 = vmatpush1.msra.mxu0 0.0
    %958 = vmatprep.subr.mxu0 0.0
    %959 = vmatpush1.msra.mxu0 0.0
    %960 = vmatprep.subr.mxu0 0.0
    %961 = vmatpush1.msra.mxu0 0.0
    %962 = vmatprep.subr.mxu0 0.0
    %963 = vmatpush1.msra.mxu0 0.0
    %964 = vmatprep.subr.mxu0 0.0
    %965 = vmatpush1.msra.mxu0 0.0
    %966 = vmatprep.subr.mxu0 0.0
    %967 = vmatpush1.msra.mxu0 0.0
    %968 = vmatprep.subr.mxu0 0.0
    %969 = vmatpush1.msra.mxu0 0.0
    %970 = vmatprep.subr.mxu0 0.0
    %971 = vmatpush1.msra.mxu0 0.0
    %972 = vmatprep.subr.mxu0 0.0
    %973 = vmatpush1.msra.mxu0 0.0
    %974 = vmatprep.subr.mxu0 0.0
    %975 = vmatpush1.msra.mxu0 0.0
    %976 = vmatprep.subr.mxu0 0.0
    %977 = vmatpush1.msra.mxu0 0.0
    %978 = vmatprep.subr.mxu0 0.0
    %979 = vmatpush1.msra.mxu0 0.0
    %980 = vmatprep.subr.mxu0 0.0
    %981 = vmatpush1.msra.mxu0 0.0
    %982 = vmatprep.subr.mxu0 0.0
    %983 = vmatpush1.msra.mxu0 0.0
    %984 = vmatprep.subr.mxu0 0.0
    %985 = vmatpush1.msra.mxu0 0.0
    %986 = vmatprep.subr.mxu0 0.0
    %987 = vmatpush1.msra.mxu0 0.0
    %988 = vmatprep.mubr.f32.mxu0 0.0
    %989 = vmatmul.mubr.f32.gmra.mrb[0].mxu0 %v855
    %v990 = vpop.f32.mrb[0].mxu0
    %v991 = vadd.f32 %v912, %v990
    %v992 = vpop.f32.mrb[0].mxu0
    %v993 = vadd.f32 %v916, %v992
    %994 = vmatprep.mubr.f32.mxu0 0.0
    %995 = vmatmul.mubr.f32.gmra.mrb[0].mxu0 %v856
    %v996 = vpop.f32.mrb[0].mxu0
    %v997 = vadd.f32 %v912, %v996
    %v998 = vpop.f32.mrb[0].mxu0
    %v999 = vadd.f32 %v916, %v998
    %1000 = vdwg.mxu0
    %1001 = vmatprep.subr.mxu0 0.0
    %1002 = vmatpush1.msra.mxu0 %v860
    %1003 = vmatprep.subr.mxu0 0.0
    %1004 = vmatpush1.msra.mxu0 %v863
    %1005 = vmatprep.subr.mxu0 0.0
    %1006 = vmatpush1.msra.mxu0 %v866
    %1007 = vmatprep.subr.mxu0 0.0
    %1008 = vmatpush1.msra.mxu0 %v869
    %1009 = vmatprep.subr.mxu0 0.0
    %1010 = vmatpush1.msra.mxu0 %v872
    %1011 = vmatprep.subr.mxu0 0.0
    %1012 = vmatpush1.msra.mxu0 %v875
    %1013 = vmatprep.subr.mxu0 0.0
    %1014 = vmatpush1.msra.mxu0 %v878
    %1015 = vmatprep.subr.mxu0 0.0
    %1016 = vmatpush1.msra.mxu0 %v881
    %1017 = vmatprep.subr.mxu0 0.0
    %1018 = vmatpush1.msra.mxu0 %v884
    %1019 = vmatprep.subr.mxu0 0.0
    %1020 = vmatpush1.msra.mxu0 %v887
    %1021 = vmatprep.subr.mxu0 0.0
    %1022 = vmatpush1.msra.mxu0 %v890
    %1023 = vmatprep.subr.mxu0 0.0
    %1024 = vmatpush1.msra.mxu0 %v893
    %1025 = vmatprep.subr.mxu0 0.0
    %1026 = vmatpush1.msra.mxu0 %v896
    %1027 = vmatprep.subr.mxu0 0.0
    %1028 = vmatpush1.msra.mxu0 %v899
    %1029 = vmatprep.subr.mxu0 0.0
    %1030 = vmatpush1.msra.mxu0 %v902
    %1031 = vmatprep.subr.mxu0 0.0
    %1032 = vmatpush1.msra.mxu0 %v905
    %1033 = vmatprep.subr.mxu0 0.0
    %1034 = vmatpush1.msra.mxu0 0.0
    %1035 = vmatprep.subr.mxu0 0.0
    %1036 = vmatpush1.msra.mxu0 0.0
    %1037 = vmatprep.subr.mxu0 0.0
    %1038 = vmatpush1.msra.mxu0 0.0
    %1039 = vmatprep.subr.mxu0 0.0
    %1040 = vmatpush1.msra.mxu0 0.0
    %1041 = vmatprep.subr.mxu0 0.0
    %1042 = vmatpush1.msra.mxu0 0.0
    %1043 = vmatprep.subr.mxu0 0.0
    %1044 = vmatpush1.msra.mxu0 0.0
    %1045 = vmatprep.subr.mxu0 0.0
    %1046 = vmatpush1.msra.mxu0 0.0
    %1047 = vmatprep.subr.mxu0 0.0
    %1048 = vmatpush1.msra.mxu0 0.0
    %1049 = vmatprep.subr.mxu0 0.0
    %1050 = vmatpush1.msra.mxu0 0.0
    %1051 = vmatprep.subr.mxu0 0.0
    %1052 = vmatpush1.msra.mxu0 0.0
    %1053 = vmatprep.subr.mxu0 0.0
    %1054 = vmatpush1.msra.mxu0 0.0
    %1055 = vmatprep.subr.mxu0 0.0
    %1056 = vmatpush1.msra.mxu0 0.0
    %1057 = vmatprep.subr.mxu0 0.0
    %1058 = vmatpush1.msra.mxu0 0.0
    %1059 = vmatprep.subr.mxu0 0.0
    %1060 = vmatpush1.msra.mxu0 0.0
    %1061 = vmatprep.subr.mxu0 0.0
    %1062 = vmatpush1.msra.mxu0 0.0
    %1063 = vmatprep.subr.mxu0 0.0
    %1064 = vmatpush1.msra.mxu0 0.0
    %1065 = vmatprep.mubr.f32.mxu0 0.0
    %1066 = vmatmul.mubr.f32.gmra.mrb[0].mxu0 %v855
    %v1067 = vpop.f32.mrb[0].mxu0
    %v1068 = vadd.f32 %v920, %v1067
    %v1069 = vpop.f32.mrb[0].mxu0
    %1070 = vmatprep.mubr.f32.mxu0 0.0
    %1071 = vmatmul.mubr.f32.gmra.mrb[0].mxu0 %v856
    %v1072 = vpop.f32.mrb[0].mxu0
    %v1073 = vadd.f32 %v920, %v1072
    %v1074 = vpop.f32.mrb[0].mxu0
    %1075 = vdwg.mxu0
    %v1076 = vmax.f32 %v991, 0.0
    %v1077 = vmax.f32 %v993, 0.0
    %v1078 = vmax.f32 %v1068, 0.0
    %v1079 = vmax.f32 %v997, 0.0
    %v1080 = vmax.f32 %v999, 0.0
    %v1081 = vmax.f32 %v1073, 0.0
    %1082 = vmatprep.subr.mxu0 0.0
    %1083 = vmatpush1.xpose.msra.mxu0 %v1078
    %1084 = vmatprep.subr.mxu0 0.0
    %1085 = vmatpush1.xpose.msra.mxu0 0.0
    %1086 = vmatprep.subr.mxu0 0.0
    %1087 = vmatpush1.xpose.msra.mxu0 0.0
    %1088 = vmatprep.subr.mxu0 0.0
    %1089 = vmatpush1.xpose.msra.mxu0 0.0
    %1090 = vmatprep.subr.mxu0 0.0
    %1091 = vmatpush1.xpose.msra.mxu0 0.0
    %1092 = vmatprep.subr.mxu0 0.0
    %1093 = vmatpush1.xpose.msra.mxu0 0.0
    %1094 = vmatprep.subr.mxu0 0.0
    %1095 = vmatpush1.xpose.msra.mxu0 0.0
    %1096 = vmatprep.subr.mxu0 0.0
    %1097 = vmatpush1.xpose.msra.mxu0 0.0
    %1098 = vmatprep.subr.mxu0 0.0
    %1099 = vmatpush1.xpose.msra.mxu0 0.0
    %1100 = vmatprep.subr.mxu0 0.0
    %1101 = vmatpush1.xpose.msra.mxu0 0.0
    %1102 = vmatprep.subr.mxu0 0.0
    %1103 = vmatpush1.xpose.msra.mxu0 0.0
    %1104 = vmatprep.subr.mxu0 0.0
    %1105 = vmatpush1.xpose.msra.mxu0 0.0
    %1106 = vmatprep.subr.mxu0 0.0
    %1107 = vmatpush1.xpose.msra.mxu0 0.0
    %1108 = vmatprep.subr.mxu0 0.0
    %1109 = vmatpush1.xpose.msra.mxu0 0.0
    %1110 = vmatprep.subr.mxu0 0.0
    %1111 = vmatpush1.xpose.msra.mxu0 0.0
    %1112 = vmatprep.subr.mxu0 0.0
    %1113 = vmatpush1.xpose.msra.mxu0 0.0
    %1114 = vmatprep.subr.mxu0 0.0
    %1115 = vmatpush1.xpose.msra.mxu0 0.0
    %1116 = vmatprep.subr.mxu0 0.0
    %1117 = vmatpush1.xpose.msra.mxu0 0.0
    %1118 = vmatprep.subr.mxu0 0.0
    %1119 = vmatpush1.xpose.msra.mxu0 0.0
    %1120 = vmatprep.subr.mxu0 0.0
    %1121 = vmatpush1.xpose.msra.mxu0 0.0
    %1122 = vmatprep.subr.mxu0 0.0
    %1123 = vmatpush1.xpose.msra.mxu0 0.0
    %1124 = vmatprep.subr.mxu0 0.0
    %1125 = vmatpush1.xpose.msra.mxu0 0.0
    %1126 = vmatprep.subr.mxu0 0.0
    %1127 = vmatpush1.xpose.msra.mxu0 0.0
    %1128 = vmatprep.subr.mxu0 0.0
    %1129 = vmatpush1.xpose.msra.mxu0 0.0
    %1130 = vmatprep.subr.mxu0 0.0
    %1131 = vmatpush1.xpose.msra.mxu0 0.0
    %1132 = vmatprep.subr.mxu0 0.0
    %1133 = vmatpush1.xpose.msra.mxu0 0.0
    %1134 = vmatprep.subr.mxu0 0.0
    %1135 = vmatpush1.xpose.msra.mxu0 0.0
    %1136 = vmatprep.subr.mxu0 0.0
    %1137 = vmatpush1.xpose.msra.mxu0 0.0
    %1138 = vmatprep.subr.mxu0 0.0
    %1139 = vmatpush1.xpose.msra.mxu0 0.0
    %1140 = vmatprep.subr.mxu0 0.0
    %1141 = vmatpush1.xpose.msra.mxu0 0.0
    %1142 = vmatprep.subr.mxu0 0.0
    %1143 = vmatpush1.xpose.msra.mxu0 0.0
    %1144 = vmatprep.subr.mxu0 0.0
    %1145 = vmatpush1.xpose.msra.mxu0 0.0
    %1146 = vmatprep.mubr.f32.mxu0 0.0
    %1147 = vmatmul.mubr.f32.gmra.mrb[0].mxu0 %v1077
    %v1148 = vpop.f32.mrb[0].mxu0
    %v1149 = vadd.f32 0.0, %v1148
    %v1150 = vpop.f32.mrb[0].mxu0
    %1151 = vdwg.mxu0
    %1152 = vmatprep.subr.mxu0 0.0
    %1153 = vmatpush1.xpose.msra.mxu0 %v1081
    %1154 = vmatprep.subr.mxu0 0.0
    %1155 = vmatpush1.xpose.msra.mxu0 0.0
    %1156 = vmatprep.subr.mxu0 0.0
    %1157 = vmatpush1.xpose.msra.mxu0 0.0
    %1158 = vmatprep.subr.mxu0 0.0
    %1159 = vmatpush1.xpose.msra.mxu0 0.0
    %1160 = vmatprep.subr.mxu0 0.0
    %1161 = vmatpush1.xpose.msra.mxu0 0.0
    %1162 = vmatprep.subr.mxu0 0.0
    %1163 = vmatpush1.xpose.msra.mxu0 0.0
    %1164 = vmatprep.subr.mxu0 0.0
    %1165 = vmatpush1.xpose.msra.mxu0 0.0
    %1166 = vmatprep.subr.mxu0 0.0
    %1167 = vmatpush1.xpose.msra.mxu0 0.0
    %1168 = vmatprep.subr.mxu0 0.0
    %1169 = vmatpush1.xpose.msra.mxu0 0.0
    %1170 = vmatprep.subr.mxu0 0.0
    %1171 = vmatpush1.xpose.msra.mxu0 0.0
    %1172 = vmatprep.subr.mxu0 0.0
    %1173 = vmatpush1.xpose.msra.mxu0 0.0
    %1174 = vmatprep.subr.mxu0 0.0
    %1175 = vmatpush1.xpose.msra.mxu0 0.0
    %1176 = vmatprep.subr.mxu0 0.0
    %1177 = vmatpush1.xpose.msra.mxu0 0.0
    %1178 = vmatprep.subr.mxu0 0.0
    %1179 = vmatpush1.xpose.msra.mxu0 0.0
    %1180 = vmatprep.subr.mxu0 0.0
    %1181 = vmatpush1.xpose.msra.mxu0 0.0
    %1182 = vmatprep.subr.mxu0 0.0
    %1183 = vmatpush1.xpose.msra.mxu0 0.0
    %1184 = vmatprep.subr.mxu0 0.0
    %1185 = vmatpush1.xpose.msra.mxu0 0.0
    %1186 = vmatprep.subr.mxu0 0.0
    %1187 = vmatpush1.xpose.msra.mxu0 0.0
    %1188 = vmatprep.subr.mxu0 0.0
    %1189 = vmatpush1.xpose.msra.mxu0 0.0
    %1190 = vmatprep.subr.mxu0 0.0
    %1191 = vmatpush1.xpose.msra.mxu0 0.0
    %1192 = vmatprep.subr.mxu0 0.0
    %1193 = vmatpush1.xpose.msra.mxu0 0.0
    %1194 = vmatprep.subr.mxu0 0.0
    %1195 = vmatpush1.xpose.msra.mxu0 0.0
    %1196 = vmatprep.subr.mxu0 0.0
    %1197 = vmatpush1.xpose.msra.mxu0 0.0
    %1198 = vmatprep.subr.mxu0 0.0
    %1199 = vmatpush1.xpose.msra.mxu0 0.0
    %1200 = vmatprep.subr.mxu0 0.0
    %1201 = vmatpush1.xpose.msra.mxu0 0.0
    %1202 = vmatprep.subr.mxu0 0.0
    %1203 = vmatpush1.xpose.msra.mxu0 0.0
    %1204 = vmatprep.subr.mxu0 0.0
    %1205 = vmatpush1.xpose.msra.mxu0 0.0
    %1206 = vmatprep.subr.mxu0 0.0
    %1207 = vmatpush1.xpose.msra.mxu0 0.0
    %1208 = vmatprep.subr.mxu0 0.0
    %1209 = vmatpush1.xpose.msra.mxu0 0.0
    %1210 = vmatprep.subr.mxu0 0.0
    %1211 = vmatpush1.xpose.msra.mxu0 0.0
    %1212 = vmatprep.subr.mxu0 0.0
    %1213 = vmatpush1.xpose.msra.mxu0 0.0
    %1214 = vmatprep.subr.mxu0 0.0
    %1215 = vmatpush1.xpose.msra.mxu0 0.0
    %1216 = vmatprep.mubr.f32.mxu0 0.0
    %1217 = vmatmul.mubr.f32.gmra.mrb[0].mxu0 %v1080
    %v1218 = vpop.f32.mrb[0].mxu0
    %v1219 = vadd.f32 0.0, %v1218
    %v1220 = vpop.f32.mrb[0].mxu0
    %1221 = vdwg.mxu0
    %v1222 = vmul.f32 %v1149, %v120
    %v1223 = vmul.f32 %v1219, %v121
    %v1224 = vsub.f32 %v1222, %v584
    %v1225 = vsub.f32 %v1223, %v585
    %v1226 = vsel %vm588, %v1224, -inf
    %1227 = vmax.xlane.f32.xlu0 %v1226
    %v1228 = vpop.xlane.xlu0 %1227
    %v1229 = vsel %vm588, %v1225, -inf
    %1230 = vmax.xlane.f32.xlu0 %v1229
    %v1231 = vpop.xlane.xlu0 %1230
    %v1232 = vsub.f32 %v1224, %v1228
    %v1233 = vsub.f32 %v1225, %v1231
    %v1234 = vmul.f32 %v1232, 1.442695
    %v1235 = vpow.pop %v1234
    %v1236 = vmul.f32 %v1233, 1.442695
    %v1237 = vpow.pop %v1236
    %v1238 = vsel %vm588, %v1235, 0.0
    %1239 = vadd.xlane.f32.xlu0 %v1238
    %v1240 = vpop.xlane.xlu0 %1239
    %v1241 = vsel %vm588, %v1237, 0.0
    %1242 = vadd.xlane.f32.xlu0 %v1241
    %v1243 = vpop.xlane.xlu0 %1242
    %v1244 = vrcp.pop %v1240
    %v1245 = vmul.f32 %v1235, %v1244
    %v1246 = vrcp.pop %v1243
    %v1247 = vmul.f32 %v1237, %v1246
    %v1249 = vsel %vm588, %v1245, 0
    %1251 = vmatprep.subr.mxu0 0.0
    %1252 = vmatpush1.msra.mxu0 %v1076
    %1253 = vmatprep.subr.mxu0 0.0
    %1254 = vmatpush1.msra.mxu0 0.0
    %1255 = vmatprep.subr.mxu0 0.0
    %1256 = vmatpush1.msra.mxu0 0.0
    %1257 = vmatprep.subr.mxu0 0.0
    %1258 = vmatpush1.msra.mxu0 0.0
    %1259 = vmatprep.subr.mxu0 0.0
    %1260 = vmatpush1.msra.mxu0 0.0
    %1261 = vmatprep.subr.mxu0 0.0
    %1262 = vmatpush1.msra.mxu0 0.0
    %1263 = vmatprep.subr.mxu0 0.0
    %1264 = vmatpush1.msra.mxu0 0.0
    %1265 = vmatprep.subr.mxu0 0.0
    %1266 = vmatpush1.msra.mxu0 0.0
    %1267 = vmatprep.subr.mxu0 0.0
    %1268 = vmatpush1.msra.mxu0 0.0
    %1269 = vmatprep.subr.mxu0 0.0
    %1270 = vmatpush1.msra.mxu0 0.0
    %1271 = vmatprep.subr.mxu0 0.0
    %1272 = vmatpush1.msra.mxu0 0.0
    %1273 = vmatprep.subr.mxu0 0.0
    %1274 = vmatpush1.msra.mxu0 0.0
    %1275 = vmatprep.subr.mxu0 0.0
    %1276 = vmatpush1.msra.mxu0 0.0
    %1277 = vmatprep.subr.mxu0 0.0
    %1278 = vmatpush1.msra.mxu0 0.0
    %1279 = vmatprep.subr.mxu0 0.0
    %1280 = vmatpush1.msra.mxu0 0.0
    %1281 = vmatprep.subr.mxu0 0.0
    %1282 = vmatpush1.msra.mxu0 0.0
    %1283 = vmatprep.subr.mxu0 0.0
    %1284 = vmatpush1.msra.mxu0 0.0
    %1285 = vmatprep.subr.mxu0 0.0
    %1286 = vmatpush1.msra.mxu0 0.0
    %1287 = vmatprep.subr.mxu0 0.0
    %1288 = vmatpush1.msra.mxu0 0.0
    %1289 = vmatprep.subr.mxu0 0.0
    %1290 = vmatpush1.msra.mxu0 0.0
    %1291 = vmatprep.subr.mxu0 0.0
    %1292 = vmatpush1.msra.mxu0 0.0
    %1293 = vmatprep.subr.mxu0 0.0
    %1294 = vmatpush1.msra.mxu0 0.0
    %1295 = vmatprep.subr.mxu0 0.0
    %1296 = vmatpush1.msra.mxu0 0.0
    %1297 = vmatprep.subr.mxu0 0.0
    %1298 = vmatpush1.msra.mxu0 0.0
    %1299 = vmatprep.subr.mxu0 0.0
    %1300 = vmatpush1.msra.mxu0 0.0
    %1301 = vmatprep.subr.mxu0 0.0
    %1302 = vmatpush1.msra.mxu0 0.0
    %1303 = vmatprep.subr.mxu0 0.0
    %1304 = vmatpush1.msra.mxu0 0.0
    %1305 = vmatprep.subr.mxu0 0.0
    %1306 = vmatpush1.msra.mxu0 0.0
    %1307 = vmatprep.subr.mxu0 0.0
    %1308 = vmatpush1.msra.mxu0 0.0
    %1309 = vmatprep.subr.mxu0 0.0
    %1310 = vmatpush1.msra.mxu0 0.0
    %1311 = vmatprep.subr.mxu0 0.0
    %1312 = vmatpush1.msra.mxu0 0.0
    %1313 = vmatprep.subr.mxu0 0.0
    %1314 = vmatpush1.msra.mxu0 0.0
    %1315 = vmatprep.mubr.f32.mxu0 0.0
    %1316 = vmatmul.mubr.f32.gmra.mrb[0].mxu0 %v1249
    %v1317 = vpop.f32.mrb[0].mxu0
    %v1318 = vadd.f32 0.0, %v1317
    %v1319 = vpop.f32.mrb[0].mxu0
    %1320 = vdwg.mxu0
    %v1322 = vsel %vm588, %v1247, 0
    %1324 = vmatprep.subr.mxu0 0.0
    %1325 = vmatpush1.msra.mxu0 %v1079
    %1326 = vmatprep.subr.mxu0 0.0
    %1327 = vmatpush1.msra.mxu0 0.0
    %1328 = vmatprep.subr.mxu0 0.0
    %1329 = vmatpush1.msra.mxu0 0.0
    %1330 = vmatprep.subr.mxu0 0.0
    %1331 = vmatpush1.msra.mxu0 0.0
    %1332 = vmatprep.subr.mxu0 0.0
    %1333 = vmatpush1.msra.mxu0 0.0
    %1334 = vmatprep.subr.mxu0 0.0
    %1335 = vmatpush1.msra.mxu0 0.0
    %1336 = vmatprep.subr.mxu0 0.0
    %1337 = vmatpush1.msra.mxu0 0.0
    %1338 = vmatprep.subr.mxu0 0.0
    %1339 = vmatpush1.msra.mxu0 0.0
    %1340 = vmatprep.subr.mxu0 0.0
    %1341 = vmatpush1.msra.mxu0 0.0
    %1342 = vmatprep.subr.mxu0 0.0
    %1343 = vmatpush1.msra.mxu0 0.0
    %1344 = vmatprep.subr.mxu0 0.0
    %1345 = vmatpush1.msra.mxu0 0.0
    %1346 = vmatprep.subr.mxu0 0.0
    %1347 = vmatpush1.msra.mxu0 0.0
    %1348 = vmatprep.subr.mxu0 0.0
    %1349 = vmatpush1.msra.mxu0 0.0
    %1350 = vmatprep.subr.mxu0 0.0
    %1351 = vmatpush1.msra.mxu0 0.0
    %1352 = vmatprep.subr.mxu0 0.0
    %1353 = vmatpush1.msra.mxu0 0.0
    %1354 = vmatprep.subr.mxu0 0.0
    %1355 = vmatpush1.msra.mxu0 0.0
    %1356 = vmatprep.subr.mxu0 0.0
    %1357 = vmatpush1.msra.mxu0 0.0
    %1358 = vmatprep.subr.mxu0 0.0
    %1359 = vmatpush1.msra.mxu0 0.0
    %1360 = vmatprep.subr.mxu0 0.0
    %1361 = vmatpush1.msra.mxu0 0.0
    %1362 = vmatprep.subr.mxu0 0.0
    %1363 = vmatpush1.msra.mxu0 0.0
    %1364 = vmatprep.subr.mxu0 0.0
    %1365 = vmatpush1.msra.mxu0 0.0
    %1366 = vmatprep.subr.mxu0 0.0
    %1367 = vmatpush1.msra.mxu0 0.0
    %1368 = vmatprep.subr.mxu0 0.0
    %1369 = vmatpush1.msra.mxu0 0.0
    %1370 = vmatprep.subr.mxu0 0.0
    %1371 = vmatpush1.msra.mxu0 0.0
    %1372 = vmatprep.subr.mxu0 0.0
    %1373 = vmatpush1.msra.mxu0 0.0
    %1374 = vmatprep.subr.mxu0 0.0
    %1375 = vmatpush1.msra.mxu0 0.0
    %1376 = vmatprep.subr.mxu0 0.0
    %1377 = vmatpush1.msra.mxu0 0.0
    %1378 = vmatprep.subr.mxu0 0.0
    %1379 = vmatpush1.msra.mxu0 0.0
    %1380 = vmatprep.subr.mxu0 0.0
    %1381 = vmatpush1.msra.mxu0 0.0
    %1382 = vmatprep.subr.mxu0 0.0
    %1383 = vmatpush1.msra.mxu0 0.0
    %1384 = vmatprep.subr.mxu0 0.0
    %1385 = vmatpush1.msra.mxu0 0.0
    %1386 = vmatprep.subr.mxu0 0.0
    %1387 = vmatpush1.msra.mxu0 0.0
    %1388 = vmatprep.mubr.f32.mxu0 0.0
    %1389 = vmatmul.mubr.f32.gmra.mrb[0].mxu0 %v1322
    %v1390 = vpop.f32.mrb[0].mxu0
    %v1391 = vadd.f32 0.0, %v1390
    %v1392 = vpop.f32.mrb[0].mxu0
    %1393 = vdwg.mxu0
    %s1394 = scalar_lea.vmem [#allocation10], 128
    %v1395 = vld [vmem:[%s1394] sm:$0xff]
    %v1396 = vld [vmem:[%s1394 + $0x8] sm:$0xff]
    %v1397 = vld [vmem:[%s1394 + $0x10] sm:$0xff]
    %v1398 = vld [vmem:[%s1394 + $0x18] sm:$0xff]
    %v1399 = vld [vmem:[%s1394 + $0x20] sm:$0xff]
    %v1400 = vld [vmem:[%s1394 + $0x28] sm:$0xff]
    %v1401 = vld [vmem:[%s1394 + $0x30] sm:$0xff]
    %v1402 = vld [vmem:[%s1394 + $0x38] sm:$0xff]
    %v1403 = vld [vmem:[%s1394 + $0x40] sm:$0xff]
    %v1404 = vld [vmem:[%s1394 + $0x48] sm:$0xff]
    %v1405 = vld [vmem:[%s1394 + $0x50] sm:$0xff]
    %v1406 = vld [vmem:[%s1394 + $0x58] sm:$0xff]
    %v1407 = vld [vmem:[%s1394 + $0x60] sm:$0xff]
    %v1408 = vld [vmem:[%s1394 + $0x68] sm:$0xff]
    %v1409 = vld [vmem:[%s1394 + $0x70] sm:$0xff]
    %v1410 = vld [vmem:[%s1394 + $0x78] sm:$0xff]
    %s1411 = scalar_lea.vmem %s7, 1
    %v1412 = vld [vmem:[%s1411] sm:$0x1]
    %v1414 = vlaneseq
    %v1415 = vshrl.u32 %v1414, 7
    %v1416 = vsub.s32 0, %v1415
    %v1417 = vrot.slane %v1412, %v1416
    %1419 = vmatprep.subr.mxu0 0.0
    %1420 = vmatpush1.msra.mxu0 %v1395
    %1421 = vmatprep.subr.mxu0 0.0
    %1422 = vmatpush1.msra.mxu0 %v1396
    %1423 = vmatprep.subr.mxu0 0.0
    %1424 = vmatpush1.msra.mxu0 %v1397
    %1425 = vmatprep.subr.mxu0 0.0
    %1426 = vmatpush1.msra.mxu0 %v1398
    %1427 = vmatprep.subr.mxu0 0.0
    %1428 = vmatpush1.msra.mxu0 %v1399
    %1429 = vmatprep.subr.mxu0 0.0
    %1430 = vmatpush1.msra.mxu0 %v1400
    %1431 = vmatprep.subr.mxu0 0.0
    %1432 = vmatpush1.msra.mxu0 %v1401
    %1433 = vmatprep.subr.mxu0 0.0
    %1434 = vmatpush1.msra.mxu0 %v1402
    %1435 = vmatprep.subr.mxu0 0.0
    %1436 = vmatpush1.msra.mxu0 %v1403
    %1437 = vmatprep.subr.mxu0 0.0
    %1438 = vmatpush1.msra.mxu0 %v1404
    %1439 = vmatprep.subr.mxu0 0.0
    %1440 = vmatpush1.msra.mxu0 %v1405
    %1441 = vmatprep.subr.mxu0 0.0
    %1442 = vmatpush1.msra.mxu0 %v1406
    %1443 = vmatprep.subr.mxu0 0.0
    %1444 = vmatpush1.msra.mxu0 %v1407
    %1445 = vmatprep.subr.mxu0 0.0
    %1446 = vmatpush1.msra.mxu0 %v1408
    %1447 = vmatprep.subr.mxu0 0.0
    %1448 = vmatpush1.msra.mxu0 %v1409
    %1449 = vmatprep.subr.mxu0 0.0
    %1450 = vmatpush1.msra.mxu0 %v1410
    %1451 = vmatprep.subr.mxu0 0.0
    %1452 = vmatpush1.msra.mxu0 0.0
    %1453 = vmatprep.subr.mxu0 0.0
    %1454 = vmatpush1.msra.mxu0 0.0
    %1455 = vmatprep.subr.mxu0 0.0
    %1456 = vmatpush1.msra.mxu0 0.0
    %1457 = vmatprep.subr.mxu0 0.0
    %1458 = vmatpush1.msra.mxu0 0.0
    %1459 = vmatprep.subr.mxu0 0.0
    %1460 = vmatpush1.msra.mxu0 0.0
    %1461 = vmatprep.subr.mxu0 0.0
    %1462 = vmatpush1.msra.mxu0 0.0
    %1463 = vmatprep.subr.mxu0 0.0
    %1464 = vmatpush1.msra.mxu0 0.0
    %1465 = vmatprep.subr.mxu0 0.0
    %1466 = vmatpush1.msra.mxu0 0.0
    %1467 = vmatprep.subr.mxu0 0.0
    %1468 = vmatpush1.msra.mxu0 0.0
    %1469 = vmatprep.subr.mxu0 0.0
    %1470 = vmatpush1.msra.mxu0 0.0
    %1471 = vmatprep.subr.mxu0 0.0
    %1472 = vmatpush1.msra.mxu0 0.0
    %1473 = vmatprep.subr.mxu0 0.0
    %1474 = vmatpush1.msra.mxu0 0.0
    %1475 = vmatprep.subr.mxu0 0.0
    %1476 = vmatpush1.msra.mxu0 0.0
    %1477 = vmatprep.subr.mxu0 0.0
    %1478 = vmatpush1.msra.mxu0 0.0
    %1479 = vmatprep.subr.mxu0 0.0
    %1480 = vmatpush1.msra.mxu0 0.0
    %1481 = vmatprep.subr.mxu0 0.0
    %1482 = vmatpush1.msra.mxu0 0.0
    %1483 = vmatprep.mubr.f32.mxu0 0.0
    %1484 = vmatmul.mubr.f32.gmra.mrb[0].mxu0 %v1318
    %v1485 = vpop.f32.mrb[0].mxu0
    %v1486 = vadd.f32 %v1417, %v1485
    %v1487 = vpop.f32.mrb[0].mxu0
    %1488 = vmatprep.mubr.f32.mxu0 0.0
    %1489 = vmatmul.mubr.f32.gmra.mrb[0].mxu0 %v1391
    %v1490 = vpop.f32.mrb[0].mxu0
    %v1491 = vadd.f32 %v1417, %v1490
    %v1492 = vpop.f32.mrb[0].mxu0
    %1493 = vdwg.mxu0
    %v1494 = vmax.f32 %v1486, 0.0
    %v1495 = vmax.f32 %v1491, 0.0
    %v1496 = vld [vmem:[#allocation11] sm:$0xff]
    %v1497 = vld [vmem:[#allocation11 + $0x8] sm:$0xff]
    %v1498 = vld [vmem:[#allocation11 + $0x10] sm:$0xff]
    %v1499 = vld [vmem:[#allocation11 + $0x18] sm:$0xff]
    %v1500 = vld [vmem:[#allocation11 + $0x20] sm:$0xff]
    %v1501 = vld [vmem:[#allocation11 + $0x28] sm:$0xff]
    %v1502 = vld [vmem:[#allocation11 + $0x30] sm:$0xff]
    %v1503 = vld [vmem:[#allocation11 + $0x38] sm:$0xff]
    %v1504 = vld [vmem:[#allocation11 + $0x40] sm:$0xff]
    %v1505 = vld [vmem:[#allocation11 + $0x48] sm:$0xff]
    %v1506 = vld [vmem:[#allocation11 + $0x50] sm:$0xff]
    %v1507 = vld [vmem:[#allocation11 + $0x58] sm:$0xff]
    %v1508 = vld [vmem:[#allocation11 + $0x60] sm:$0xff]
    %v1509 = vld [vmem:[#allocation11 + $0x68] sm:$0xff]
    %v1510 = vld [vmem:[#allocation11 + $0x70] sm:$0xff]
    %v1511 = vld [vmem:[#allocation11 + $0x78] sm:$0xff]
    %v1512 = vld [vmem:[%s9] sm:$0x1]
    %v1514 = vlaneseq
    %v1515 = vshrl.u32 %v1514, 7
    %v1516 = vsub.s32 0, %v1515
    %v1517 = vrot.slane %v1512, %v1516
    %1519 = vmatprep.subr.mxu0 0.0
    %1520 = vmatpush1.msra.mxu0 %v1496
    %1521 = vmatprep.subr.mxu0 0.0
    %1522 = vmatpush1.msra.mxu0 %v1497
    %1523 = vmatprep.subr.mxu0 0.0
    %1524 = vmatpush1.msra.mxu0 %v1498
    %1525 = vmatprep.subr.mxu0 0.0
    %1526 = vmatpush1.msra.mxu0 %v1499
    %1527 = vmatprep.subr.mxu0 0.0
    %1528 = vmatpush1.msra.mxu0 %v1500
    %1529 = vmatprep.subr.mxu0 0.0
    %1530 = vmatpush1.msra.mxu0 %v1501
    %1531 = vmatprep.subr.mxu0 0.0
    %1532 = vmatpush1.msra.mxu0 %v1502
    %1533 = vmatprep.subr.mxu0 0.0
    %1534 = vmatpush1.msra.mxu0 %v1503
    %1535 = vmatprep.subr.mxu0 0.0
    %1536 = vmatpush1.msra.mxu0 %v1504
    %1537 = vmatprep.subr.mxu0 0.0
    %1538 = vmatpush1.msra.mxu0 %v1505
    %1539 = vmatprep.subr.mxu0 0.0
    %1540 = vmatpush1.msra.mxu0 %v1506
    %1541 = vmatprep.subr.mxu0 0.0
    %1542 = vmatpush1.msra.mxu0 %v1507
    %1543 = vmatprep.subr.mxu0 0.0
    %1544 = vmatpush1.msra.mxu0 %v1508
    %1545 = vmatprep.subr.mxu0 0.0
    %1546 = vmatpush1.msra.mxu0 %v1509
    %1547 = vmatprep.subr.mxu0 0.0
    %1548 = vmatpush1.msra.mxu0 %v1510
    %1549 = vmatprep.subr.mxu0 0.0
    %1550 = vmatpush1.msra.mxu0 %v1511
    %1551 = vmatprep.subr.mxu0 0.0
    %1552 = vmatpush1.msra.mxu0 0.0
    %1553 = vmatprep.subr.mxu0 0.0
    %1554 = vmatpush1.msra.mxu0 0.0
    %1555 = vmatprep.subr.mxu0 0.0
    %1556 = vmatpush1.msra.mxu0 0.0
    %1557 = vmatprep.subr.mxu0 0.0
    %1558 = vmatpush1.msra.mxu0 0.0
    %1559 = vmatprep.subr.mxu0 0.0
    %1560 = vmatpush1.msra.mxu0 0.0
    %1561 = vmatprep.subr.mxu0 0.0
    %1562 = vmatpush1.msra.mxu0 0.0
    %1563 = vmatprep.subr.mxu0 0.0
    %1564 = vmatpush1.msra.mxu0 0.0
    %1565 = vmatprep.subr.mxu0 0.0
    %1566 = vmatpush1.msra.mxu0 0.0
    %1567 = vmatprep.subr.mxu0 0.0
    %1568 = vmatpush1.msra.mxu0 0.0
    %1569 = vmatprep.subr.mxu0 0.0
    %1570 = vmatpush1.msra.mxu0 0.0
    %1571 = vmatprep.subr.mxu0 0.0
    %1572 = vmatpush1.msra.mxu0 0.0
    %1573 = vmatprep.subr.mxu0 0.0
    %1574 = vmatpush1.msra.mxu0 0.0
    %1575 = vmatprep.subr.mxu0 0.0
    %1576 = vmatpush1.msra.mxu0 0.0
    %1577 = vmatprep.subr.mxu0 0.0
    %1578 = vmatpush1.msra.mxu0 0.0
    %1579 = vmatprep.subr.mxu0 0.0
    %1580 = vmatpush1.msra.mxu0 0.0
    %1581 = vmatprep.subr.mxu0 0.0
    %1582 = vmatpush1.msra.mxu0 0.0
    %1583 = vmatprep.mubr.f32.mxu0 0.0
    %1584 = vmatmul.mubr.f32.gmra.mrb[0].mxu0 %v1494
    %v1585 = vpop.f32.mrb[0].mxu0
    %v1586 = vadd.f32 %v1517, %v1585
    %v1587 = vpop.f32.mrb[0].mxu0
    %1588 = vmatprep.mubr.f32.mxu0 0.0
    %1589 = vmatmul.mubr.f32.gmra.mrb[0].mxu0 %v1495
    %v1590 = vpop.f32.mrb[0].mxu0
    %v1591 = vadd.f32 %v1517, %v1590
    %v1592 = vpop.f32.mrb[0].mxu0
    %1593 = vdwg.mxu0
    %1594 = vst [vmem:[#allocation13] sm:$0xff] %v1586
    %1595 = vst [vmem:[#allocation13 + $0x8] sm:$0xff] %v1591
    // Predicated region
    $region66: #{tpu_custom_call.1} parent=1 // pred_check
      _
    $region67: #{tpu_custom_call.1} parent=1 // pred_check_branch
      %1597 = sbr.rel (0) target = $region69
    $region68: #{tpu_custom_call.1} parent=1 // pred_region
      %s1599 = ssub.s32 256, 256
      %1600 = vsyncadd [#allocation4], %s1599
      %s1601 = sshll.u32 [#allocation13], 4
      %s1602 = int_to_ptr.vmem [resolvable:$true] %s1601
      %1607 = dma.vmem_to_hbm [thread:$0]  %s1602, 256, %s10, [#allocation4], 128, 128, 8
    $region69: #{tpu_custom_call.1} parent=1 // pred_fallthru
      _
    // Predicated region
    $region70: #{tpu_custom_call.1} parent=1 // pred_check
      _
    $region71: #{tpu_custom_call.1} parent=1 // pred_check_branch
      %1609 = sbr.rel (0) target = $region73
    $region72: #{tpu_custom_call.1} parent=1 // pred_region
      %1610 = dma.done [#allocation4], 256
    $region73: #{tpu_custom_call.1} parent=1 // pred_fallthru
      _
    %1611 = vsyncpa [#allocation3], 1
    %1612 = vsyncpa [#allocation6], 1
    %1613 = vsyncpa [#allocation9], 1
    %1614 = vsyncpa [#allocation12], 1
    %1615 = vsyncpa [#allocation4], 1

</llo_original>
